<compile_context>
chip_gen: v7x
topology: tpu7x:2x2x1
jax: 0.10.0
libtpu: 0.0.40
codegen_flags: <defaults>
</compile_context>

<pallas_src>
from functools import partial
import math

import jax
import jax.numpy as jnp
from jax.experimental import pallas as pl
from jax.experimental.pallas import tpu as pltpu

LANE = 128
_RESIDENT_VMEM_BUDGET = 24 * 1024 * 1024   # keep the resident path v7x-safe (64 MiB VMEM)
_VMEM_LIMIT = 48 * 1024 * 1024             # scoped VMEM limit (v5e default is only 16 MiB)

_DTYPES = {"float32": jnp.float32, "bfloat16": jnp.bfloat16}


def _round_up(x, m):
    return ((x + m - 1) // m) * m


def _pick_tile(extent, cap=512):
    """Largest multiple-of-128 tile <= cap that divides `extent` (extent % 128 == 0)."""
    cap = min(cap, extent)
    for cand in (512, 384, 256, 128):
        if cand <= cap and extent % cand == 0:
            return cand
    return 128


def _pick_row_tile(extent, cap=512):
    # Keep >= 2 row tiles when possible so a v7x chip can shard the "parallel"
    # grid axis across both TensorCores.
    if extent >= 256:
        cap = min(cap, extent // 2)
    return _pick_tile(extent, cap)


def _pad2(a, rows, cols, dtype):
    r, c = a.shape
    out = a.astype(dtype)
    if rows != r or cols != c:
        out = jnp.pad(out, ((0, rows - r), (0, cols - c)))
    return out


# --------------------------------------------------------------------------------------
# Path A: single fully-VMEM-resident fused kernel (small complexes)
# --------------------------------------------------------------------------------------
def _resident_kernel(xs_ref, w_ref, aup0_ref, b1_ref, b1n_ref, ad1_ref, au1_ref,
                     b2_ref, b2n_ref, ad2_ref, o0_ref, o1_ref, o2_ref, *, n0p, n1p):
    dt = xs_ref.dtype
    # Stage 1: one matmul for all 7 convolutions (packed channel layout).
    y = jnp.dot(xs_ref[...], w_ref[...], preferred_element_type=jnp.float32).astype(dt)
    y0 = y[:n0p]
    y1 = y[n0p:n0p + n1p]
    y2 = y[n0p + n1p:]

    # Stage 2 + sigmoid, all in VMEM.
    m0 = (jnp.dot(aup0_ref[...], y0, preferred_element_type=jnp.float32)
          + jnp.dot(b1_ref[...], y1, preferred_element_type=jnp.float32))
    o0_ref[...] = jax.nn.sigmoid(m0).astype(o0_ref.dtype)

    adj1 = (ad1_ref[...] + au1_ref[...]).astype(dt)   # Ad1 + Au1, never hits HBM
    m1 = (jnp.dot(b1n_ref[...], y0, preferred_element_type=jnp.float32)
          + jnp.dot(adj1, y1, preferred_element_type=jnp.float32)
          + jnp.dot(b2_ref[...], y2, preferred_element_type=jnp.float32))
    o1_ref[...] = jax.nn.sigmoid(m1).astype(o1_ref.dtype)

    m2 = (jnp.dot(b2n_ref[...], y1, preferred_element_type=jnp.float32)
          + jnp.dot(ad2_ref[...], y2, preferred_element_type=jnp.float32))
    o2_ref[...] = jax.nn.sigmoid(m2).astype(o2_ref.dtype)


def _resident_forward(xs, w, nbhd, rows_p, cw, n0p, n1p):
    out_shape = tuple(jax.ShapeDtypeStruct((r, cw), jnp.float32) for r in rows_p)
    return pl.pallas_call(
        partial(_resident_kernel, n0p=n0p, n1p=n1p),
        out_shape=out_shape,
        compiler_params=pltpu.CompilerParams(vmem_limit_bytes=_VMEM_LIMIT),
    )(xs, w, *nbhd)


# --------------------------------------------------------------------------------------
# Path B stage 1: tiled fused feature transform  Y = Xs_packed @ W_packed
# --------------------------------------------------------------------------------------
def _feature_kernel(x_ref, w_ref, y_ref):
    y_ref[...] = jnp.dot(x_ref[...], w_ref[...],
                         preferred_element_type=jnp.float32).astype(y_ref.dtype)


def _feature_transform(xs, w, *, tm):
    ns, cw = xs.shape
    return pl.pallas_call(
        _feature_kernel,
        out_shape=jax.ShapeDtypeStruct((ns, cw), xs.dtype),
        grid_spec=pltpu.PrefetchScalarGridSpec(
            num_scalar_prefetch=0,
            grid=(ns // tm,),
            in_specs=[pl.BlockSpec((tm, cw), lambda i: (i, 0)),
                      pl.BlockSpec((cw, cw), lambda i: (0, 0))],
            out_specs=pl.BlockSpec((tm, cw), lambda i: (i, 0)),
        ),
        compiler_params=pltpu.CompilerParams(
            dimension_semantics=("parallel",),
            vmem_limit_bytes=_VMEM_LIMIT),
    )(xs, w)


# --------------------------------------------------------------------------------------
# Path B stage 2: tiled, K-segmented neighborhood matmul + sigmoid (per target)
#   out = sigmoid( sum_r  N_r @ Y[rank-r rows] ) — accumulated directly in the f32 output.
# --------------------------------------------------------------------------------------
def _make_neighborhood_kernel(seg_bounds):
    n_ops = len(seg_bounds)

    def kernel(*refs):
        n_refs = refs[:n_ops]
        h_ref = refs[n_ops]
        o_ref = refs[n_ops + 1]
        k = pl.program_id(1)

        @pl.when(k == 0)
        def _init():
            o_ref[...] = jnp.zeros_like(o_ref)

        for idx, (s, e) in enumerate(seg_bounds):
            @pl.when(jnp.logical_and(k >= s, k < e))
            def _acc(idx=idx):
                o_ref[...] += jnp.dot(n_refs[idx][...], h_ref[...],
                                      preferred_element_type=jnp.float32)

        @pl.when(k == pl.num_programs(1) - 1)
        def _finalize():
            o_ref[...] = jax.nn.sigmoid(o_ref[...])

    return kernel


def _neighborhood_conv(operands, rows_p, y_all, *, tm, tk):
    """operands: list of (padded matrix (mp, rows_p[r]), source rank r)."""
    mats = [m for m, _ in operands]
    ranks = [r for _, r in operands]
    mp = mats[0].shape[0]
    cw = y_all.shape[1]

    covered = sorted(set(ranks))
    assert covered == list(range(covered[0], covered[-1] + 1)), \
        "source ranks must be contiguous"

    # Static, contiguous K segments (one per covered rank, in rank order).
    seg = {}
    start = 0
    for r in covered:
        nb = rows_p[r] // tk
        seg[r] = (start, start + nb)
        start += nb
    kb = start
    y_off_blocks = sum(rows_p[q] for q in range(covered[0])) // tk

    in_specs = []
    for r in ranks:
        s, nb = seg[r][0], seg[r][1] - seg[r][0]
        # Active segment: advance block index.  Outside: park on first/last block so the
        # revisited index suppresses any extra DMA (each operand is fetched exactly once).
        in_specs.append(pl.BlockSpec(
            (tm, tk),
            lambda i, k, s=s, nb=nb: (i, jnp.minimum(jnp.maximum(k - s, 0), nb - 1))))
    in_specs.append(
        pl.BlockSpec((tk, cw), lambda i, k, off=y_off_blocks: (k + off, 0)))

    kernel = _make_neighborhood_kernel(tuple(seg[r] for r in ranks))

    return pl.pallas_call(
        kernel,
        out_shape=jax.ShapeDtypeStruct((mp, cw), jnp.float32),
        grid_spec=pltpu.PrefetchScalarGridSpec(
            num_scalar_prefetch=0,
            grid=(mp // tm, kb),
            in_specs=in_specs,
            out_specs=pl.BlockSpec((tm, cw), lambda i, k: (i, 0)),
        ),
        compiler_params=pltpu.CompilerParams(
            dimension_semantics=("parallel", "arbitrary"),
            vmem_limit_bytes=_VMEM_LIMIT),
    )(*mats, y_all)


# --------------------------------------------------------------------------------------
# Wrapper
# --------------------------------------------------------------------------------------
@partial(jax.jit, static_argnames=("compute_dtype", "force_tiled"))
def scconv_layer(x0, x1, x2,
                 incidence_1, incidence_1_norm, incidence_2, incidence_2_norm,
                 adjacency_up_0_norm, adjacency_up_1_norm,
                 adjacency_down_1_norm, adjacency_down_2_norm,
                 params, *, compute_dtype="bfloat16", force_tiled=False):
    cdt = _DTYPES[compute_dtype]

    n0, c0 = x0.shape
    n1, c1 = x1.shape
    n2, c2 = x2.shape

    # Packed channel layout: all ranks share ONE lane block.
    off0, off1, off2 = 0, c0, c0 + c1
    cw = _round_up(c0 + c1 + c2, LANE)

    # Row padding decoupled from the tile size (128-granular).
    n0p = _round_up(n0, LANE)
    n1p = _round_up(n1, LANE)
    n2p = _round_up(n2, LANE)
    ns = n0p + n1p + n2p
    rows_p = (n0p, n1p, n2p)

    # ---- stacked, lane-packed source features ----
    xs = jnp.zeros((ns, cw), cdt)
    xs = xs.at[:n0, off0:off0 + c0].set(x0.astype(cdt))
    xs = xs.at[n0p:n0p + n1, off1:off1 + c1].set(x1.astype(cdt))
    xs = xs.at[n0p + n1p:n0p + n1p + n2, off2:off2 + c2].set(x2.astype(cdt))

    # ---- packed block weight: block (source rank r, target rank t) = W_{r->t} ----
    w = jnp.zeros((cw, cw), cdt)
    w = w.at[off0:off0 + c0, off0:off0 + c0].set(params["w00"].astype(cdt))
    w = w.at[off0:off0 + c0, off1:off1 + c1].set(params["w01"].astype(cdt))
    w = w.at[off1:off1 + c1, off0:off0 + c0].set(params["w10"].astype(cdt))
    w = w.at[off1:off1 + c1, off1:off1 + c1].set(params["w11"].astype(cdt))
    w = w.at[off1:off1 + c1, off2:off2 + c2].set(params["w12"].astype(cdt))
    w = w.at[off2:off2 + c2, off1:off1 + c1].set(params["w21"].astype(cdt))
    w = w.at[off2:off2 + c2, off2:off2 + c2].set(params["w22"].astype(cdt))

    # ---- zero-padded neighborhood operands (NO concatenation is materialized) ----
    aup0 = _pad2(adjacency_up_0_norm, n0p, n0p, cdt)
    b1 = _pad2(incidence_1, n0p, n1p, cdt)
    b1n = _pad2(incidence_1_norm, n1p, n0p, cdt)
    ad1 = _pad2(adjacency_down_1_norm, n1p, n1p, cdt)
    au1 = _pad2(adjacency_up_1_norm, n1p, n1p, cdt)
    b2 = _pad2(incidence_2, n1p, n2p, cdt)
    b2n = _pad2(incidence_2_norm, n2p, n1p, cdt)
    ad2 = _pad2(adjacency_down_2_norm, n2p, n2p, cdt)
    nbhd = (aup0, b1, b1n, ad1, au1, b2, b2n, ad2)

    # ---- dispatch: fully VMEM-resident fused kernel vs tiled two-stage path ----
    in_bytes = (sum(m.size * m.dtype.itemsize for m in nbhd)
                + xs.size * xs.dtype.itemsize + w.size * w.dtype.itemsize)
    y_bytes = ns * cw * (4 + xs.dtype.itemsize)
    out_bytes = ns * cw * 4
    footprint = 2 * in_bytes + y_bytes + 2 * out_bytes

    if (not force_tiled) and footprint <= _RESIDENT_VMEM_BUDGET:
        out0p, out1p, out2p = _resident_forward(xs, w, nbhd, rows_p, cw, n0p, n1p)
    else:
        # Stage 1: one fused feature matmul for all 7 convolutions.
        y_all = _feature_transform(xs, w, tm=_pick_row_tile(ns))
        # Stage 2: per-target K-segmented neighborhood matmuls (+ sigmoid).
        tk = _pick_tile(math.gcd(math.gcd(n0p, n1p), n2p))
        out0p = _neighborhood_conv([(aup0, 0), (b1, 1)], rows_p, y_all,
                                   tm=_pick_row_tile(n0p), tk=tk)
        out1p = _neighborhood_conv([(b1n, 0), (ad1, 1), (au1, 1), (b2, 2)], rows_p, y_all,
                                   tm=_pick_row_tile(n1p), tk=tk)
        out2p = _neighborhood_conv([(b2n, 1), (ad2, 2)], rows_p, y_all,
                                   tm=_pick_row_tile(n2p), tk=tk)

    return (out0p[:n0, off0:off0 + c0].astype(x0.dtype),
            out1p[:n1, off1:off1 + c1].astype(x1.dtype),
            out2p[:n2, off2:off2 + c2].astype(x2.dtype))


# --------------------------------------------------------------------------------------
# Reference + test harness
# --------------------------------------------------------------------------------------
def _xavier_uniform(key, shape, gain=1.414):
    fan_in, fan_out = shape
    limit = gain * jnp.sqrt(6.0 / (fan_in + fan_out))
    return jax.random.uniform(key, shape, jnp.float32, -limit, limit)


def _reference(x0, x1, x2, b1, b1n, b2, b2n, aup0, aup1, ad1, ad2, p):
    m00 = aup0 @ (x0 @ p["w00"])
    m10 = b1 @ (x1 @ p["w10"])
    m01 = b1n @ (x0 @ p["w01"])
    m11 = (ad1 + aup1) @ (x1 @ p["w11"])
    m21 = b2 @ (x2 @ p["w21"])
    m12 = b2n @ (x1 @ p["w12"])
    m22 = ad2 @ (x2 @ p["w22"])
    return (jax.nn.sigmoid(m00 + m10),
            jax.nn.sigmoid(m01 + m11 + m21),
            jax.nn.sigmoid(m12 + m22))


if __name__ == "__main__":
    # Small synthetic simplicial complex.
    n_nodes, n_edges, n_faces = 16, 32, 8
    node_ch, edge_ch, face_ch = 8, 16, 8

    key = jax.random.PRNGKey(0)
    keys = jax.random.split(key, 20)

    x0 = jax.random.normal(keys[0], (n_nodes, node_ch), jnp.float32)
    x1 = jax.random.normal(keys[1], (n_edges, edge_ch), jnp.float32)
    x2 = jax.random.normal(keys[2], (n_faces, face_ch), jnp.float32)

    incidence_1 = jax.random.normal(keys[3], (n_nodes, n_edges), jnp.float32)        # B1
    incidence_1_norm = jax.random.normal(keys[4], (n_edges, n_nodes), jnp.float32)   # B1~
    incidence_2 = jax.random.normal(keys[5], (n_edges, n_faces), jnp.float32)        # B2
    incidence_2_norm = jax.random.normal(keys[6], (n_faces, n_edges), jnp.float32)   # B2~
    adjacency_up_0_norm = jax.random.normal(keys[7], (n_nodes, n_nodes), jnp.float32)
    adjacency_up_1_norm = jax.random.normal(keys[8], (n_edges, n_edges), jnp.float32)
    adjacency_down_1_norm = jax.random.normal(keys[9], (n_edges, n_edges), jnp.float32)
    adjacency_down_2_norm = jax.random.normal(keys[10], (n_faces, n_faces), jnp.float32)

    # Conv weights W[in_channels, out_channels], xavier_uniform (gain=1.414), deterministic.
    params = {
        "w00": _xavier_uniform(keys[11], (node_ch, node_ch)),
        "w01": _xavier_uniform(keys[12], (node_ch, edge_ch)),
        "w10": _xavier_uniform(keys[13], (edge_ch, node_ch)),
        "w11": _xavier_uniform(keys[14], (edge_ch, edge_ch)),
        "w12": _xavier_uniform(keys[15], (edge_ch, face_ch)),
        "w21": _xavier_uniform(keys[16], (face_ch, edge_ch)),
        "w22": _xavier_uniform(keys[17], (face_ch, face_ch)),
    }

    args = (x0, x1, x2,
            incidence_1, incidence_1_norm, incidence_2, incidence_2_norm,
            adjacency_up_0_norm, adjacency_up_1_norm,
            adjacency_down_1_norm, adjacency_down_2_norm,
            params)

    r0, r1, r2 = _reference(x0, x1, x2,
                            incidence_1, incidence_1_norm, incidence_2, incidence_2_norm,
                            adjacency_up_0_norm, adjacency_up_1_norm,
                            adjacency_down_1_norm, adjacency_down_2_norm,
                            params)

    # 1) f32, fully-VMEM-resident fused path (default dispatch at this size): exact check.
    o0, o1, o2 = jax.block_until_ready(scconv_layer(*args, compute_dtype="float32"))
    assert o0.shape == (n_nodes, node_ch)
    assert o1.shape == (n_edges, edge_ch)
    assert o2.shape == (n_faces, face_ch)
    assert jnp.allclose(o0, r0, atol=1e-4), "resident f32: node output mismatch"
    assert jnp.allclose(o1, r1, atol=1e-4), "resident f32: edge output mismatch"
    assert jnp.allclose(o2, r2, atol=1e-4), "resident f32: face output mismatch"

    # 2) f32, forced tiled two-stage path (the large-complex code path): exact check.
    t0, t1, t2 = jax.block_until_ready(
        scconv_layer(*args, compute_dtype="float32", force_tiled=True))
    assert jnp.allclose(t0, r0, atol=1e-4), "tiled f32: node output mismatch"
    assert jnp.allclose(t1, r1, atol=1e-4), "tiled f32: edge output mismatch"
    assert jnp.allclose(t2, r2, atol=1e-4), "tiled f32: face output mismatch"

    # 3) bf16 operands (default / recommended production config): f32 accumulation + f32
    #    sigmoid keep the error small; tolerance loosened per the perf review.
    b0, b1_, b2_ = jax.block_until_ready(scconv_layer(*args))
    assert jnp.allclose(b0, r0, atol=5e-2), "bf16: node output mismatch"
    assert jnp.allclose(b1_, r1, atol=5e-2), "bf16: edge output mismatch"
    assert jnp.allclose(b2_, r2, atol=5e-2), "bf16: face output mismatch"

    print("KERNEL_OK")
</pallas_src>

<mosaic_0001>
module attributes {stable_mosaic.version = 11 : i64} {
  func.func @_resident_kernel(%arg0: memref<384x128xf32, #tpu.memory_space<vmem>>, %arg1: memref<128x128xf32, #tpu.memory_space<vmem>>, %arg2: memref<128x128xf32, #tpu.memory_space<vmem>>, %arg3: memref<128x128xf32, #tpu.memory_space<vmem>>, %arg4: memref<128x128xf32, #tpu.memory_space<vmem>>, %arg5: memref<128x128xf32, #tpu.memory_space<vmem>>, %arg6: memref<128x128xf32, #tpu.memory_space<vmem>>, %arg7: memref<128x128xf32, #tpu.memory_space<vmem>>, %arg8: memref<128x128xf32, #tpu.memory_space<vmem>>, %arg9: memref<128x128xf32, #tpu.memory_space<vmem>>, %arg10: memref<128x128xf32, #tpu.memory_space<vmem>>, %arg11: memref<128x128xf32, #tpu.memory_space<vmem>>, %arg12: memref<128x128xf32, #tpu.memory_space<vmem>>) attributes {dimension_semantics = [], scalar_prefetch = 0 : i64, scratch_operands = 0 : i64, tpu.core_type = #tpu.core_type<tc>} {
    %c0 = arith.constant 0 : index
    %c0_0 = arith.constant 0 : index
    %0 = vector.load %arg0[%c0, %c0_0] : memref<384x128xf32, #tpu.memory_space<vmem>>, vector<384x128xf32>
    %c0_1 = arith.constant 0 : index
    %c0_2 = arith.constant 0 : index
    %1 = vector.load %arg1[%c0_1, %c0_2] : memref<128x128xf32, #tpu.memory_space<vmem>>, vector<128x128xf32>
    %cst = arith.constant dense<0.000000e+00> : vector<384x128xf32>
    %2 = tpu.matmul %0, %1, %cst {dimension_numbers = #tpu.dot_dimension_numbers<[1], [0], [0], [1], [0, 0, 1, 1], [], []>} : vector<384x128xf32>, vector<128x128xf32>, vector<384x128xf32> -> vector<384x128xf32>
    %3 = vector.extract_strided_slice %2 {offsets = [0, 0], sizes = [128, 128], strides = [1, 1]} : vector<384x128xf32> to vector<128x128xf32>
    %4 = vector.extract_strided_slice %2 {offsets = [128, 0], sizes = [128, 128], strides = [1, 1]} : vector<384x128xf32> to vector<128x128xf32>
    %5 = vector.extract_strided_slice %2 {offsets = [256, 0], sizes = [128, 128], strides = [1, 1]} : vector<384x128xf32> to vector<128x128xf32>
    %c0_3 = arith.constant 0 : index
    %c0_4 = arith.constant 0 : index
    %6 = vector.load %arg2[%c0_3, %c0_4] : memref<128x128xf32, #tpu.memory_space<vmem>>, vector<128x128xf32>
    %cst_5 = arith.constant dense<0.000000e+00> : vector<128x128xf32>
    %7 = tpu.matmul %6, %3, %cst_5 {dimension_numbers = #tpu.dot_dimension_numbers<[1], [0], [0], [1], [0, 0, 1, 1], [], []>} : vector<128x128xf32>, vector<128x128xf32>, vector<128x128xf32> -> vector<128x128xf32>
    %c0_6 = arith.constant 0 : index
    %c0_7 = arith.constant 0 : index
    %8 = vector.load %arg3[%c0_6, %c0_7] : memref<128x128xf32, #tpu.memory_space<vmem>>, vector<128x128xf32>
    %cst_8 = arith.constant dense<0.000000e+00> : vector<128x128xf32>
    %9 = tpu.matmul %8, %4, %cst_8 {dimension_numbers = #tpu.dot_dimension_numbers<[1], [0], [0], [1], [0, 0, 1, 1], [], []>} : vector<128x128xf32>, vector<128x128xf32>, vector<128x128xf32> -> vector<128x128xf32>
    %10 = arith.addf %7, %9 : vector<128x128xf32>
    %11 = arith.negf %10 : vector<128x128xf32>
    %12 = math.exp %11 : vector<128x128xf32>
    %cst_9 = arith.constant 1.000000e+00 : f32
    %13 = vector.broadcast %cst_9 : f32 to vector<128x128xf32>
    %14 = arith.addf %13, %12 : vector<128x128xf32>
    %15 = arith.divf %13, %14 : vector<128x128xf32>
    %c0_10 = arith.constant 0 : index
    %c0_11 = arith.constant 0 : index
    %16 = vector.load %arg10[%c0_10, %c0_11] : memref<128x128xf32, #tpu.memory_space<vmem>>, vector<128x128xf32>
    tpu.vector_store %arg10[%c0_10, %c0_11], %15 {strides = array<i32>} : memref<128x128xf32, #tpu.memory_space<vmem>>, vector<128x128xf32>,
    %c0_12 = arith.constant 0 : index
    %c0_13 = arith.constant 0 : index
    %17 = vector.load %arg5[%c0_12, %c0_13] : memref<128x128xf32, #tpu.memory_space<vmem>>, vector<128x128xf32>
    %c0_14 = arith.constant 0 : index
    %c0_15 = arith.constant 0 : index
    %18 = vector.load %arg6[%c0_14, %c0_15] : memref<128x128xf32, #tpu.memory_space<vmem>>, vector<128x128xf32>
    %19 = arith.addf %17, %18 : vector<128x128xf32>
    %c0_16 = arith.constant 0 : index
    %c0_17 = arith.constant 0 : index
    %20 = vector.load %arg4[%c0_16, %c0_17] : memref<128x128xf32, #tpu.memory_space<vmem>>, vector<128x128xf32>
    %cst_18 = arith.constant dense<0.000000e+00> : vector<128x128xf32>
    %21 = tpu.matmul %20, %3, %cst_18 {dimension_numbers = #tpu.dot_dimension_numbers<[1], [0], [0], [1], [0, 0, 1, 1], [], []>} : vector<128x128xf32>, vector<128x128xf32>, vector<128x128xf32> -> vector<128x128xf32>
    %cst_19 = arith.constant dense<0.000000e+00> : vector<128x128xf32>
    %22 = tpu.matmul %19, %4, %cst_19 {dimension_numbers = #tpu.dot_dimension_numbers<[1], [0], [0], [1], [0, 0, 1, 1], [], []>} : vector<128x128xf32>, vector<128x128xf32>, vector<128x128xf32> -> vector<128x128xf32>
    %23 = arith.addf %21, %22 : vector<128x128xf32>
    %c0_20 = arith.constant 0 : index
    %c0_21 = arith.constant 0 : index
    %24 = vector.load %arg7[%c0_20, %c0_21] : memref<128x128xf32, #tpu.memory_space<vmem>>, vector<128x128xf32>
    %cst_22 = arith.constant dense<0.000000e+00> : vector<128x128xf32>
    %25 = tpu.matmul %24, %5, %cst_22 {dimension_numbers = #tpu.dot_dimension_numbers<[1], [0], [0], [1], [0, 0, 1, 1], [], []>} : vector<128x128xf32>, vector<128x128xf32>, vector<128x128xf32> -> vector<128x128xf32>
    %26 = arith.addf %23, %25 : vector<128x128xf32>
    %27 = arith.negf %26 : vector<128x128xf32>
    %28 = math.exp %27 : vector<128x128xf32>
    %cst_23 = arith.constant 1.000000e+00 : f32
    %29 = vector.broadcast %cst_23 : f32 to vector<128x128xf32>
    %30 = arith.addf %29, %28 : vector<128x128xf32>
    %31 = arith.divf %29, %30 : vector<128x128xf32>
    %c0_24 = arith.constant 0 : index
    %c0_25 = arith.constant 0 : index
    %32 = vector.load %arg11[%c0_24, %c0_25] : memref<128x128xf32, #tpu.memory_space<vmem>>, vector<128x128xf32>
    tpu.vector_store %arg11[%c0_24, %c0_25], %31 {strides = array<i32>} : memref<128x128xf32, #tpu.memory_space<vmem>>, vector<128x128xf32>,
    %c0_26 = arith.constant 0 : index
    %c0_27 = arith.constant 0 : index
    %33 = vector.load %arg8[%c0_26, %c0_27] : memref<128x128xf32, #tpu.memory_space<vmem>>, vector<128x128xf32>
    %cst_28 = arith.constant dense<0.000000e+00> : vector<128x128xf32>
    %34 = tpu.matmul %33, %4, %cst_28 {dimension_numbers = #tpu.dot_dimension_numbers<[1], [0], [0], [1], [0, 0, 1, 1], [], []>} : vector<128x128xf32>, vector<128x128xf32>, vector<128x128xf32> -> vector<128x128xf32>
    %c0_29 = arith.constant 0 : index
    %c0_30 = arith.constant 0 : index
    %35 = vector.load %arg9[%c0_29, %c0_30] : memref<128x128xf32, #tpu.memory_space<vmem>>, vector<128x128xf32>
    %cst_31 = arith.constant dense<0.000000e+00> : vector<128x128xf32>
    %36 = tpu.matmul %35, %5, %cst_31 {dimension_numbers = #tpu.dot_dimension_numbers<[1], [0], [0], [1], [0, 0, 1, 1], [], []>} : vector<128x128xf32>, vector<128x128xf32>, vector<128x128xf32> -> vector<128x128xf32>
    %37 = arith.addf %34, %36 : vector<128x128xf32>
    %38 = arith.negf %37 : vector<128x128xf32>
    %39 = math.exp %38 : vector<128x128xf32>
    %cst_32 = arith.constant 1.000000e+00 : f32
    %40 = vector.broadcast %cst_32 : f32 to vector<128x128xf32>
    %41 = arith.addf %40, %39 : vector<128x128xf32>
    %42 = arith.divf %40, %41 : vector<128x128xf32>
    %c0_33 = arith.constant 0 : index
    %c0_34 = arith.constant 0 : index
    %43 = vector.load %arg12[%c0_33, %c0_34] : memref<128x128xf32, #tpu.memory_space<vmem>>, vector<128x128xf32>
    tpu.vector_store %arg12[%c0_33, %c0_34], %42 {strides = array<i32>} : memref<128x128xf32, #tpu.memory_space<vmem>>, vector<128x128xf32>,
    return
  }
}

</mosaic_0001>

<llo_original>
// kernel: scconv_layer.1
$region0: #{scconv_layer.1}
  #allocation0 [shape = 'u32[]', space=smem, size = 0x4, offset = 0x4, fixed_abs, tag = 'smem constant byte address 0x4 - core index']
  #allocation1 [shape = 'u32[144,128]{1,0:T(1,128)}', space=vmem, size = 0x12000, scoped, tag = 'internal scratch']
  %s0 = inlined_call_operand.vmem [shape: f32[384,128], index: 0, kind: input, shape index: {}]
  %s1 = inlined_call_operand.vmem [shape: f32[128,128], index: 1, kind: input, shape index: {}]
  %s2 = inlined_call_operand.vmem [shape: f32[128,128], index: 2, kind: input, shape index: {}]
  %s3 = inlined_call_operand.vmem [shape: f32[128,128], index: 3, kind: input, shape index: {}]
  %s4 = inlined_call_operand.vmem [shape: f32[128,128], index: 4, kind: input, shape index: {}]
  %s5 = inlined_call_operand.vmem [shape: f32[128,128], index: 5, kind: input, shape index: {}]
  %s6 = inlined_call_operand.vmem [shape: f32[128,128], index: 6, kind: input, shape index: {}]
  %s7 = inlined_call_operand.vmem [shape: f32[128,128], index: 7, kind: input, shape index: {}]
  %s8 = inlined_call_operand.vmem [shape: f32[128,128], index: 8, kind: input, shape index: {}]
  %s9 = inlined_call_operand.vmem [shape: f32[128,128], index: 9, kind: input, shape index: {}]
  %s10 = inlined_call_operand.vmem [shape: f32[128,128], index: 10, kind: output, shape index: {0}]
  %s11 = inlined_call_operand.vmem [shape: f32[128,128], index: 11, kind: output, shape index: {1}]
  %s12 = inlined_call_operand.vmem [shape: f32[128,128], index: 12, kind: output, shape index: {2}]
  %13 = xla_tuple %s10, %s11, %s12
  %s14 = sld [smem:[#allocation0]]
  $region66: #{scconv_layer.1} parent=0
    _
  %s16 = ssub.s32 1, %s14
  %s17 = scalar_select 0, %s16, %s14
  // Predicated region
  $region2: #{scconv_layer.1} parent=0 // pred_check
    _
  $region3: #{scconv_layer.1} parent=0 // pred_check_branch
    %19 = sbr.rel (0) target = $region5
  $region4: #{scconv_layer.1} parent=0 // pred_region
    _
  $region5: #{scconv_layer.1} parent=0 // pred_fallthru
    _
  // Predicated region
  $region6: #{scconv_layer.1} parent=0 // pred_check
    _
  $region7: #{scconv_layer.1} parent=0 // pred_check_branch
    %21 = sbr.rel (0) target = $region9
  $region8: #{scconv_layer.1} parent=0 // pred_region
    _
  $region9: #{scconv_layer.1} parent=0 // pred_fallthru
    _
  // Predicated region
  $region10: #{scconv_layer.1} parent=0 // pred_check
    _
  $region11: #{scconv_layer.1} parent=0 // pred_check_branch
    %23 = sbr.rel (0) target = $region13
  $region12: #{scconv_layer.1} parent=0 // pred_region
    _
  $region13: #{scconv_layer.1} parent=0 // pred_fallthru
    _
  // Predicated region
  $region14: #{scconv_layer.1} parent=0 // pred_check
    _
  $region15: #{scconv_layer.1} parent=0 // pred_check_branch
    %25 = sbr.rel (0) target = $region17
  $region16: #{scconv_layer.1} parent=0 // pred_region
    _
  $region17: #{scconv_layer.1} parent=0 // pred_fallthru
    _
  // Predicated region
  $region18: #{scconv_layer.1} parent=0 // pred_check
    _
  $region19: #{scconv_layer.1} parent=0 // pred_check_branch
    %27 = sbr.rel (0) target = $region21
  $region20: #{scconv_layer.1} parent=0 // pred_region
    _
  $region21: #{scconv_layer.1} parent=0 // pred_fallthru
    _
  // Predicated region
  $region22: #{scconv_layer.1} parent=0 // pred_check
    _
  $region23: #{scconv_layer.1} parent=0 // pred_check_branch
    %29 = sbr.rel (0) target = $region25
  $region24: #{scconv_layer.1} parent=0 // pred_region
    _
  $region25: #{scconv_layer.1} parent=0 // pred_fallthru
    _
  // Predicated region
  $region26: #{scconv_layer.1} parent=0 // pred_check
    _
  $region27: #{scconv_layer.1} parent=0 // pred_check_branch
    %31 = sbr.rel (0) target = $region29
  $region28: #{scconv_layer.1} parent=0 // pred_region
    _
  $region29: #{scconv_layer.1} parent=0 // pred_fallthru
    _
  // Predicated region
  $region30: #{scconv_layer.1} parent=0 // pred_check
    _
  $region31: #{scconv_layer.1} parent=0 // pred_check_branch
    %33 = sbr.rel (0) target = $region33
  $region32: #{scconv_layer.1} parent=0 // pred_region
    _
  $region33: #{scconv_layer.1} parent=0 // pred_fallthru
    _
  // Predicated region
  $region34: #{scconv_layer.1} parent=0 // pred_check
    _
  $region35: #{scconv_layer.1} parent=0 // pred_check_branch
    %35 = sbr.rel (0) target = $region37
  $region36: #{scconv_layer.1} parent=0 // pred_region
    _
  $region37: #{scconv_layer.1} parent=0 // pred_fallthru
    _
  // Predicated region
  $region38: #{scconv_layer.1} parent=0 // pred_check
    _
  $region39: #{scconv_layer.1} parent=0 // pred_check_branch
    %37 = sbr.rel (0) target = $region41
  $region40: #{scconv_layer.1} parent=0 // pred_region
    _
  $region41: #{scconv_layer.1} parent=0 // pred_fallthru
    _
  %v38 = vld [vmem:[%s0] sm:$0xff]
  %v39 = vld [vmem:[%s0 + $0x8] sm:$0xff]
  %v40 = vld [vmem:[%s0 + $0x10] sm:$0xff]
  %v41 = vld [vmem:[%s0 + $0x18] sm:$0xff]
  %v42 = vld [vmem:[%s0 + $0x20] sm:$0xff]
  %v43 = vld [vmem:[%s0 + $0x28] sm:$0xff]
  %v44 = vld [vmem:[%s0 + $0x30] sm:$0xff]
  %v45 = vld [vmem:[%s0 + $0x38] sm:$0xff]
  %v46 = vld [vmem:[%s0 + $0x40] sm:$0xff]
  %v47 = vld [vmem:[%s0 + $0x48] sm:$0xff]
  %v48 = vld [vmem:[%s0 + $0x50] sm:$0xff]
  %v49 = vld [vmem:[%s0 + $0x58] sm:$0xff]
  %v50 = vld [vmem:[%s0 + $0x60] sm:$0xff]
  %v51 = vld [vmem:[%s0 + $0x68] sm:$0xff]
  %v52 = vld [vmem:[%s0 + $0x70] sm:$0xff]
  %v53 = vld [vmem:[%s0 + $0x78] sm:$0xff]
  %v54 = vld [vmem:[%s0 + $0x80] sm:$0xff]
  %v55 = vld [vmem:[%s0 + $0x88] sm:$0xff]
  %v56 = vld [vmem:[%s0 + $0x90] sm:$0xff]
  %v57 = vld [vmem:[%s0 + $0x98] sm:$0xff]
  %v58 = vld [vmem:[%s0 + $0xa0] sm:$0xff]
  %v59 = vld [vmem:[%s0 + $0xa8] sm:$0xff]
  %v60 = vld [vmem:[%s0 + $0xb0] sm:$0xff]
  %v61 = vld [vmem:[%s0 + $0xb8] sm:$0xff]
  %v62 = vld [vmem:[%s0 + $0xc0] sm:$0xff]
  %v63 = vld [vmem:[%s0 + $0xc8] sm:$0xff]
  %v64 = vld [vmem:[%s0 + $0xd0] sm:$0xff]
  %v65 = vld [vmem:[%s0 + $0xd8] sm:$0xff]
  %v66 = vld [vmem:[%s0 + $0xe0] sm:$0xff]
  %v67 = vld [vmem:[%s0 + $0xe8] sm:$0xff]
  %v68 = vld [vmem:[%s0 + $0xf0] sm:$0xff]
  %v69 = vld [vmem:[%s0 + $0xf8] sm:$0xff]
  %v70 = vld [vmem:[%s0 + $0x100] sm:$0xff]
  %v71 = vld [vmem:[%s0 + $0x108] sm:$0xff]
  %v72 = vld [vmem:[%s0 + $0x110] sm:$0xff]
  %v73 = vld [vmem:[%s0 + $0x118] sm:$0xff]
  %v74 = vld [vmem:[%s0 + $0x120] sm:$0xff]
  %v75 = vld [vmem:[%s0 + $0x128] sm:$0xff]
  %v76 = vld [vmem:[%s0 + $0x130] sm:$0xff]
  %v77 = vld [vmem:[%s0 + $0x138] sm:$0xff]
  %v78 = vld [vmem:[%s0 + $0x140] sm:$0xff]
  %v79 = vld [vmem:[%s0 + $0x148] sm:$0xff]
  %v80 = vld [vmem:[%s0 + $0x150] sm:$0xff]
  %v81 = vld [vmem:[%s0 + $0x158] sm:$0xff]
  %v82 = vld [vmem:[%s0 + $0x160] sm:$0xff]
  %v83 = vld [vmem:[%s0 + $0x168] sm:$0xff]
  %v84 = vld [vmem:[%s0 + $0x170] sm:$0xff]
  %v85 = vld [vmem:[%s0 + $0x178] sm:$0xff]
  %v86 = vld [vmem:[%s1] sm:$0xff]
  %v87 = vld [vmem:[%s1 + $0x8] sm:$0xff]
  %v88 = vld [vmem:[%s1 + $0x10] sm:$0xff]
  %v89 = vld [vmem:[%s1 + $0x18] sm:$0xff]
  %v90 = vld [vmem:[%s1 + $0x20] sm:$0xff]
  %v91 = vld [vmem:[%s1 + $0x28] sm:$0xff]
  %v92 = vld [vmem:[%s1 + $0x30] sm:$0xff]
  %v93 = vld [vmem:[%s1 + $0x38] sm:$0xff]
  %v94 = vld [vmem:[%s1 + $0x40] sm:$0xff]
  %v95 = vld [vmem:[%s1 + $0x48] sm:$0xff]
  %v96 = vld [vmem:[%s1 + $0x50] sm:$0xff]
  %v97 = vld [vmem:[%s1 + $0x58] sm:$0xff]
  %v98 = vld [vmem:[%s1 + $0x60] sm:$0xff]
  %v99 = vld [vmem:[%s1 + $0x68] sm:$0xff]
  %v100 = vld [vmem:[%s1 + $0x70] sm:$0xff]
  %v101 = vld [vmem:[%s1 + $0x78] sm:$0xff]
  %102 = vmatprep.subr.mxu0 0.0
  %103 = vmatpush1.msra.mxu0 %v86
  %104 = vmatprep.subr.mxu0 0.0
  %105 = vmatpush1.msra.mxu0 %v87
  %106 = vmatprep.subr.mxu0 0.0
  %107 = vmatpush1.msra.mxu0 %v88
  %108 = vmatprep.subr.mxu0 0.0
  %109 = vmatpush1.msra.mxu0 %v89
  %110 = vmatprep.subr.mxu0 0.0
  %111 = vmatpush1.msra.mxu0 %v90
  %112 = vmatprep.subr.mxu0 0.0
  %113 = vmatpush1.msra.mxu0 %v91
  %114 = vmatprep.subr.mxu0 0.0
  %115 = vmatpush1.msra.mxu0 %v92
  %116 = vmatprep.subr.mxu0 0.0
  %117 = vmatpush1.msra.mxu0 %v93
  %118 = vmatprep.subr.mxu0 0.0
  %119 = vmatpush1.msra.mxu0 %v94
  %120 = vmatprep.subr.mxu0 0.0
  %121 = vmatpush1.msra.mxu0 %v95
  %122 = vmatprep.subr.mxu0 0.0
  %123 = vmatpush1.msra.mxu0 %v96
  %124 = vmatprep.subr.mxu0 0.0
  %125 = vmatpush1.msra.mxu0 %v97
  %126 = vmatprep.subr.mxu0 0.0
  %127 = vmatpush1.msra.mxu0 %v98
  %128 = vmatprep.subr.mxu0 0.0
  %129 = vmatpush1.msra.mxu0 %v99
  %130 = vmatprep.subr.mxu0 0.0
  %131 = vmatpush1.msra.mxu0 %v100
  %132 = vmatprep.subr.mxu0 0.0
  %133 = vmatpush1.msra.mxu0 %v101
  %134 = vmatprep.subr.mxu0 0.0
  %135 = vmatpush1.msra.mxu0 0.0
  %136 = vmatprep.subr.mxu0 0.0
  %137 = vmatpush1.msra.mxu0 0.0
  %138 = vmatprep.subr.mxu0 0.0
  %139 = vmatpush1.msra.mxu0 0.0
  %140 = vmatprep.subr.mxu0 0.0
  %141 = vmatpush1.msra.mxu0 0.0
  %142 = vmatprep.subr.mxu0 0.0
  %143 = vmatpush1.msra.mxu0 0.0
  %144 = vmatprep.subr.mxu0 0.0
  %145 = vmatpush1.msra.mxu0 0.0
  %146 = vmatprep.subr.mxu0 0.0
  %147 = vmatpush1.msra.mxu0 0.0
  %148 = vmatprep.subr.mxu0 0.0
  %149 = vmatpush1.msra.mxu0 0.0
  %150 = vmatprep.subr.mxu0 0.0
  %151 = vmatpush1.msra.mxu0 0.0
  %152 = vmatprep.subr.mxu0 0.0
  %153 = vmatpush1.msra.mxu0 0.0
  %154 = vmatprep.subr.mxu0 0.0
  %155 = vmatpush1.msra.mxu0 0.0
  %156 = vmatprep.subr.mxu0 0.0
  %157 = vmatpush1.msra.mxu0 0.0
  %158 = vmatprep.subr.mxu0 0.0
  %159 = vmatpush1.msra.mxu0 0.0
  %160 = vmatprep.subr.mxu0 0.0
  %161 = vmatpush1.msra.mxu0 0.0
  %162 = vmatprep.subr.mxu0 0.0
  %163 = vmatpush1.msra.mxu0 0.0
  %164 = vmatprep.subr.mxu0 0.0
  %165 = vmatpush1.msra.mxu0 0.0
  %166 = vmatprep.mubr.f32.mxu0 0.0
  %167 = vmatmul.mubr.f32.gmra.mrb[0].mxu0 %v38
  %v168 = vpop.f32.mrb[0].mxu0
  %v169 = vadd.f32 0.0, %v168
  %v170 = vpop.f32.mrb[0].mxu0
  %171 = vmatprep.mubr.f32.mxu0 0.0
  %172 = vmatmul.mubr.f32.gmra.mrb[0].mxu0 %v39
  %v173 = vpop.f32.mrb[0].mxu0
  %v174 = vadd.f32 0.0, %v173
  %v175 = vpop.f32.mrb[0].mxu0
  %176 = vmatprep.mubr.f32.mxu0 0.0
  %177 = vmatmul.mubr.f32.gmra.mrb[0].mxu0 %v40
  %v178 = vpop.f32.mrb[0].mxu0
  %v179 = vadd.f32 0.0, %v178
  %v180 = vpop.f32.mrb[0].mxu0
  %181 = vmatprep.mubr.f32.mxu0 0.0
  %182 = vmatmul.mubr.f32.gmra.mrb[0].mxu0 %v41
  %v183 = vpop.f32.mrb[0].mxu0
  %v184 = vadd.f32 0.0, %v183
  %v185 = vpop.f32.mrb[0].mxu0
  %186 = vmatprep.mubr.f32.mxu0 0.0
  %187 = vmatmul.mubr.f32.gmra.mrb[0].mxu0 %v42
  %v188 = vpop.f32.mrb[0].mxu0
  %v189 = vadd.f32 0.0, %v188
  %v190 = vpop.f32.mrb[0].mxu0
  %191 = vmatprep.mubr.f32.mxu0 0.0
  %192 = vmatmul.mubr.f32.gmra.mrb[0].mxu0 %v43
  %v193 = vpop.f32.mrb[0].mxu0
  %v194 = vadd.f32 0.0, %v193
  %v195 = vpop.f32.mrb[0].mxu0
  %196 = vmatprep.mubr.f32.mxu0 0.0
  %197 = vmatmul.mubr.f32.gmra.mrb[0].mxu0 %v44
  %v198 = vpop.f32.mrb[0].mxu0
  %v199 = vadd.f32 0.0, %v198
  %v200 = vpop.f32.mrb[0].mxu0
  %201 = vmatprep.mubr.f32.mxu0 0.0
  %202 = vmatmul.mubr.f32.gmra.mrb[0].mxu0 %v45
  %v203 = vpop.f32.mrb[0].mxu0
  %v204 = vadd.f32 0.0, %v203
  %v205 = vpop.f32.mrb[0].mxu0
  %206 = vmatprep.mubr.f32.mxu0 0.0
  %207 = vmatmul.mubr.f32.gmra.mrb[0].mxu0 %v46
  %v208 = vpop.f32.mrb[0].mxu0
  %v209 = vadd.f32 0.0, %v208
  %v210 = vpop.f32.mrb[0].mxu0
  %211 = vmatprep.mubr.f32.mxu0 0.0
  %212 = vmatmul.mubr.f32.gmra.mrb[0].mxu0 %v47
  %v213 = vpop.f32.mrb[0].mxu0
  %v214 = vadd.f32 0.0, %v213
  %v215 = vpop.f32.mrb[0].mxu0
  %216 = vmatprep.mubr.f32.mxu0 0.0
  %217 = vmatmul.mubr.f32.gmra.mrb[0].mxu0 %v48
  %v218 = vpop.f32.mrb[0].mxu0
  %v219 = vadd.f32 0.0, %v218
  %v220 = vpop.f32.mrb[0].mxu0
  %221 = vmatprep.mubr.f32.mxu0 0.0
  %222 = vmatmul.mubr.f32.gmra.mrb[0].mxu0 %v49
  %v223 = vpop.f32.mrb[0].mxu0
  %v224 = vadd.f32 0.0, %v223
  %v225 = vpop.f32.mrb[0].mxu0
  %226 = vmatprep.mubr.f32.mxu0 0.0
  %227 = vmatmul.mubr.f32.gmra.mrb[0].mxu0 %v50
  %v228 = vpop.f32.mrb[0].mxu0
  %v229 = vadd.f32 0.0, %v228
  %v230 = vpop.f32.mrb[0].mxu0
  %231 = vmatprep.mubr.f32.mxu0 0.0
  %232 = vmatmul.mubr.f32.gmra.mrb[0].mxu0 %v51
  %v233 = vpop.f32.mrb[0].mxu0
  %v234 = vadd.f32 0.0, %v233
  %v235 = vpop.f32.mrb[0].mxu0
  %236 = vmatprep.mubr.f32.mxu0 0.0
  %237 = vmatmul.mubr.f32.gmra.mrb[0].mxu0 %v52
  %v238 = vpop.f32.mrb[0].mxu0
  %v239 = vadd.f32 0.0, %v238
  %v240 = vpop.f32.mrb[0].mxu0
  %241 = vmatprep.mubr.f32.mxu0 0.0
  %242 = vmatmul.mubr.f32.gmra.mrb[0].mxu0 %v53
  %v243 = vpop.f32.mrb[0].mxu0
  %v244 = vadd.f32 0.0, %v243
  %v245 = vpop.f32.mrb[0].mxu0
  %246 = vmatprep.mubr.f32.mxu0 0.0
  %247 = vmatmul.mubr.f32.gmra.mrb[0].mxu0 %v54
  %v248 = vpop.f32.mrb[0].mxu0
  %v249 = vadd.f32 0.0, %v248
  %v250 = vpop.f32.mrb[0].mxu0
  %251 = vmatprep.mubr.f32.mxu0 0.0
  %252 = vmatmul.mubr.f32.gmra.mrb[0].mxu0 %v55
  %v253 = vpop.f32.mrb[0].mxu0
  %v254 = vadd.f32 0.0, %v253
  %v255 = vpop.f32.mrb[0].mxu0
  %256 = vmatprep.mubr.f32.mxu0 0.0
  %257 = vmatmul.mubr.f32.gmra.mrb[0].mxu0 %v56
  %v258 = vpop.f32.mrb[0].mxu0
  %v259 = vadd.f32 0.0, %v258
  %v260 = vpop.f32.mrb[0].mxu0
  %261 = vmatprep.mubr.f32.mxu0 0.0
  %262 = vmatmul.mubr.f32.gmra.mrb[0].mxu0 %v57
  %v263 = vpop.f32.mrb[0].mxu0
  %v264 = vadd.f32 0.0, %v263
  %v265 = vpop.f32.mrb[0].mxu0
  %266 = vmatprep.mubr.f32.mxu0 0.0
  %267 = vmatmul.mubr.f32.gmra.mrb[0].mxu0 %v58
  %v268 = vpop.f32.mrb[0].mxu0
  %v269 = vadd.f32 0.0, %v268
  %v270 = vpop.f32.mrb[0].mxu0
  %271 = vmatprep.mubr.f32.mxu0 0.0
  %272 = vmatmul.mubr.f32.gmra.mrb[0].mxu0 %v59
  %v273 = vpop.f32.mrb[0].mxu0
  %v274 = vadd.f32 0.0, %v273
  %v275 = vpop.f32.mrb[0].mxu0
  %276 = vmatprep.mubr.f32.mxu0 0.0
  %277 = vmatmul.mubr.f32.gmra.mrb[0].mxu0 %v60
  %v278 = vpop.f32.mrb[0].mxu0
  %v279 = vadd.f32 0.0, %v278
  %v280 = vpop.f32.mrb[0].mxu0
  %281 = vmatprep.mubr.f32.mxu0 0.0
  %282 = vmatmul.mubr.f32.gmra.mrb[0].mxu0 %v61
  %v283 = vpop.f32.mrb[0].mxu0
  %v284 = vadd.f32 0.0, %v283
  %v285 = vpop.f32.mrb[0].mxu0
  %286 = vmatprep.mubr.f32.mxu0 0.0
  %287 = vmatmul.mubr.f32.gmra.mrb[0].mxu0 %v62
  %v288 = vpop.f32.mrb[0].mxu0
  %v289 = vadd.f32 0.0, %v288
  %v290 = vpop.f32.mrb[0].mxu0
  %291 = vmatprep.mubr.f32.mxu0 0.0
  %292 = vmatmul.mubr.f32.gmra.mrb[0].mxu0 %v63
  %v293 = vpop.f32.mrb[0].mxu0
  %v294 = vadd.f32 0.0, %v293
  %v295 = vpop.f32.mrb[0].mxu0
  %296 = vmatprep.mubr.f32.mxu0 0.0
  %297 = vmatmul.mubr.f32.gmra.mrb[0].mxu0 %v64
  %v298 = vpop.f32.mrb[0].mxu0
  %v299 = vadd.f32 0.0, %v298
  %v300 = vpop.f32.mrb[0].mxu0
  %301 = vmatprep.mubr.f32.mxu0 0.0
  %302 = vmatmul.mubr.f32.gmra.mrb[0].mxu0 %v65
  %v303 = vpop.f32.mrb[0].mxu0
  %v304 = vadd.f32 0.0, %v303
  %v305 = vpop.f32.mrb[0].mxu0
  %306 = vmatprep.mubr.f32.mxu0 0.0
  %307 = vmatmul.mubr.f32.gmra.mrb[0].mxu0 %v66
  %v308 = vpop.f32.mrb[0].mxu0
  %v309 = vadd.f32 0.0, %v308
  %v310 = vpop.f32.mrb[0].mxu0
  %311 = vmatprep.mubr.f32.mxu0 0.0
  %312 = vmatmul.mubr.f32.gmra.mrb[0].mxu0 %v67
  %v313 = vpop.f32.mrb[0].mxu0
  %v314 = vadd.f32 0.0, %v313
  %v315 = vpop.f32.mrb[0].mxu0
  %316 = vmatprep.mubr.f32.mxu0 0.0
  %317 = vmatmul.mubr.f32.gmra.mrb[0].mxu0 %v68
  %v318 = vpop.f32.mrb[0].mxu0
  %v319 = vadd.f32 0.0, %v318
  %v320 = vpop.f32.mrb[0].mxu0
  %321 = vmatprep.mubr.f32.mxu0 0.0
  %322 = vmatmul.mubr.f32.gmra.mrb[0].mxu0 %v69
  %v323 = vpop.f32.mrb[0].mxu0
  %v324 = vadd.f32 0.0, %v323
  %v325 = vpop.f32.mrb[0].mxu0
  %326 = vmatprep.mubr.f32.mxu0 0.0
  %327 = vmatmul.mubr.f32.gmra.mrb[0].mxu0 %v70
  %v328 = vpop.f32.mrb[0].mxu0
  %v329 = vadd.f32 0.0, %v328
  %v330 = vpop.f32.mrb[0].mxu0
  %331 = vmatprep.mubr.f32.mxu0 0.0
  %332 = vmatmul.mubr.f32.gmra.mrb[0].mxu0 %v71
  %v333 = vpop.f32.mrb[0].mxu0
  %v334 = vadd.f32 0.0, %v333
  %v335 = vpop.f32.mrb[0].mxu0
  %336 = vmatprep.mubr.f32.mxu0 0.0
  %337 = vmatmul.mubr.f32.gmra.mrb[0].mxu0 %v72
  %v338 = vpop.f32.mrb[0].mxu0
  %v339 = vadd.f32 0.0, %v338
  %v340 = vpop.f32.mrb[0].mxu0
  %341 = vmatprep.mubr.f32.mxu0 0.0
  %342 = vmatmul.mubr.f32.gmra.mrb[0].mxu0 %v73
  %v343 = vpop.f32.mrb[0].mxu0
  %v344 = vadd.f32 0.0, %v343
  %v345 = vpop.f32.mrb[0].mxu0
  %346 = vmatprep.mubr.f32.mxu0 0.0
  %347 = vmatmul.mubr.f32.gmra.mrb[0].mxu0 %v74
  %v348 = vpop.f32.mrb[0].mxu0
  %v349 = vadd.f32 0.0, %v348
  %v350 = vpop.f32.mrb[0].mxu0
  %351 = vmatprep.mubr.f32.mxu0 0.0
  %352 = vmatmul.mubr.f32.gmra.mrb[0].mxu0 %v75
  %v353 = vpop.f32.mrb[0].mxu0
  %v354 = vadd.f32 0.0, %v353
  %v355 = vpop.f32.mrb[0].mxu0
  %356 = vmatprep.mubr.f32.mxu0 0.0
  %357 = vmatmul.mubr.f32.gmra.mrb[0].mxu0 %v76
  %v358 = vpop.f32.mrb[0].mxu0
  %v359 = vadd.f32 0.0, %v358
  %v360 = vpop.f32.mrb[0].mxu0
  %361 = vmatprep.mubr.f32.mxu0 0.0
  %362 = vmatmul.mubr.f32.gmra.mrb[0].mxu0 %v77
  %v363 = vpop.f32.mrb[0].mxu0
  %v364 = vadd.f32 0.0, %v363
  %v365 = vpop.f32.mrb[0].mxu0
  %366 = vmatprep.mubr.f32.mxu0 0.0
  %367 = vmatmul.mubr.f32.gmra.mrb[0].mxu0 %v78
  %v368 = vpop.f32.mrb[0].mxu0
  %v369 = vadd.f32 0.0, %v368
  %v370 = vpop.f32.mrb[0].mxu0
  %371 = vmatprep.mubr.f32.mxu0 0.0
  %372 = vmatmul.mubr.f32.gmra.mrb[0].mxu0 %v79
  %v373 = vpop.f32.mrb[0].mxu0
  %v374 = vadd.f32 0.0, %v373
  %v375 = vpop.f32.mrb[0].mxu0
  %376 = vmatprep.mubr.f32.mxu0 0.0
  %377 = vmatmul.mubr.f32.gmra.mrb[0].mxu0 %v80
  %v378 = vpop.f32.mrb[0].mxu0
  %v379 = vadd.f32 0.0, %v378
  %v380 = vpop.f32.mrb[0].mxu0
  %381 = vmatprep.mubr.f32.mxu0 0.0
  %382 = vmatmul.mubr.f32.gmra.mrb[0].mxu0 %v81
  %v383 = vpop.f32.mrb[0].mxu0
  %v384 = vadd.f32 0.0, %v383
  %v385 = vpop.f32.mrb[0].mxu0
  %386 = vmatprep.mubr.f32.mxu0 0.0
  %387 = vmatmul.mubr.f32.gmra.mrb[0].mxu0 %v82
  %v388 = vpop.f32.mrb[0].mxu0
  %v389 = vadd.f32 0.0, %v388
  %v390 = vpop.f32.mrb[0].mxu0
  %391 = vmatprep.mubr.f32.mxu0 0.0
  %392 = vmatmul.mubr.f32.gmra.mrb[0].mxu0 %v83
  %v393 = vpop.f32.mrb[0].mxu0
  %v394 = vadd.f32 0.0, %v393
  %v395 = vpop.f32.mrb[0].mxu0
  %396 = vmatprep.mubr.f32.mxu0 0.0
  %397 = vmatmul.mubr.f32.gmra.mrb[0].mxu0 %v84
  %v398 = vpop.f32.mrb[0].mxu0
  %v399 = vadd.f32 0.0, %v398
  %v400 = vpop.f32.mrb[0].mxu0
  %401 = vmatprep.mubr.f32.mxu0 0.0
  %402 = vmatmul.mubr.f32.gmra.mrb[0].mxu0 %v85
  %v403 = vpop.f32.mrb[0].mxu0
  %v404 = vadd.f32 0.0, %v403
  %v405 = vpop.f32.mrb[0].mxu0
  %406 = vdwg.mxu0
  %v407 = vld [vmem:[%s2] sm:$0xff]
  %v408 = vld [vmem:[%s2 + $0x8] sm:$0xff]
  %v409 = vld [vmem:[%s2 + $0x10] sm:$0xff]
  %v410 = vld [vmem:[%s2 + $0x18] sm:$0xff]
  %v411 = vld [vmem:[%s2 + $0x20] sm:$0xff]
  %v412 = vld [vmem:[%s2 + $0x28] sm:$0xff]
  %v413 = vld [vmem:[%s2 + $0x30] sm:$0xff]
  %v414 = vld [vmem:[%s2 + $0x38] sm:$0xff]
  %v415 = vld [vmem:[%s2 + $0x40] sm:$0xff]
  %v416 = vld [vmem:[%s2 + $0x48] sm:$0xff]
  %v417 = vld [vmem:[%s2 + $0x50] sm:$0xff]
  %v418 = vld [vmem:[%s2 + $0x58] sm:$0xff]
  %v419 = vld [vmem:[%s2 + $0x60] sm:$0xff]
  %v420 = vld [vmem:[%s2 + $0x68] sm:$0xff]
  %v421 = vld [vmem:[%s2 + $0x70] sm:$0xff]
  %v422 = vld [vmem:[%s2 + $0x78] sm:$0xff]
  %v423 = vld [vmem:[%s3] sm:$0xff]
  %v424 = vld [vmem:[%s3 + $0x8] sm:$0xff]
  %v425 = vld [vmem:[%s3 + $0x10] sm:$0xff]
  %v426 = vld [vmem:[%s3 + $0x18] sm:$0xff]
  %v427 = vld [vmem:[%s3 + $0x20] sm:$0xff]
  %v428 = vld [vmem:[%s3 + $0x28] sm:$0xff]
  %v429 = vld [vmem:[%s3 + $0x30] sm:$0xff]
  %v430 = vld [vmem:[%s3 + $0x38] sm:$0xff]
  %v431 = vld [vmem:[%s3 + $0x40] sm:$0xff]
  %v432 = vld [vmem:[%s3 + $0x48] sm:$0xff]
  %v433 = vld [vmem:[%s3 + $0x50] sm:$0xff]
  %v434 = vld [vmem:[%s3 + $0x58] sm:$0xff]
  %v435 = vld [vmem:[%s3 + $0x60] sm:$0xff]
  %v436 = vld [vmem:[%s3 + $0x68] sm:$0xff]
  %v437 = vld [vmem:[%s3 + $0x70] sm:$0xff]
  %v438 = vld [vmem:[%s3 + $0x78] sm:$0xff]
  %439 = vmatprep.subr.mxu0 0.0
  %440 = vmatpush1.msra.mxu0 %v249
  %441 = vmatprep.subr.mxu0 0.0
  %442 = vmatpush1.msra.mxu0 %v254
  %443 = vmatprep.subr.mxu0 0.0
  %444 = vmatpush1.msra.mxu0 %v259
  %445 = vmatprep.subr.mxu0 0.0
  %446 = vmatpush1.msra.mxu0 %v264
  %447 = vmatprep.subr.mxu0 0.0
  %448 = vmatpush1.msra.mxu0 %v269
  %449 = vmatprep.subr.mxu0 0.0
  %450 = vmatpush1.msra.mxu0 %v274
  %451 = vmatprep.subr.mxu0 0.0
  %452 = vmatpush1.msra.mxu0 %v279
  %453 = vmatprep.subr.mxu0 0.0
  %454 = vmatpush1.msra.mxu0 %v284
  %455 = vmatprep.subr.mxu0 0.0
  %456 = vmatpush1.msra.mxu0 %v289
  %457 = vmatprep.subr.mxu0 0.0
  %458 = vmatpush1.msra.mxu0 %v294
  %459 = vmatprep.subr.mxu0 0.0
  %460 = vmatpush1.msra.mxu0 %v299
  %461 = vmatprep.subr.mxu0 0.0
  %462 = vmatpush1.msra.mxu0 %v304
  %463 = vmatprep.subr.mxu0 0.0
  %464 = vmatpush1.msra.mxu0 %v309
  %465 = vmatprep.subr.mxu0 0.0
  %466 = vmatpush1.msra.mxu0 %v314
  %467 = vmatprep.subr.mxu0 0.0
  %468 = vmatpush1.msra.mxu0 %v319
  %469 = vmatprep.subr.mxu0 0.0
  %470 = vmatpush1.msra.mxu0 %v324
  %471 = vmatprep.subr.mxu0 0.0
  %472 = vmatpush1.msra.mxu0 0.0
  %473 = vmatprep.subr.mxu0 0.0
  %474 = vmatpush1.msra.mxu0 0.0
  %475 = vmatprep.subr.mxu0 0.0
  %476 = vmatpush1.msra.mxu0 0.0
  %477 = vmatprep.subr.mxu0 0.0
  %478 = vmatpush1.msra.mxu0 0.0
  %479 = vmatprep.subr.mxu0 0.0
  %480 = vmatpush1.msra.mxu0 0.0
  %481 = vmatprep.subr.mxu0 0.0
  %482 = vmatpush1.msra.mxu0 0.0
  %483 = vmatprep.subr.mxu0 0.0
  %484 = vmatpush1.msra.mxu0 0.0
  %485 = vmatprep.subr.mxu0 0.0
  %486 = vmatpush1.msra.mxu0 0.0
  %487 = vmatprep.subr.mxu0 0.0
  %488 = vmatpush1.msra.mxu0 0.0
  %489 = vmatprep.subr.mxu0 0.0
  %490 = vmatpush1.msra.mxu0 0.0
  %491 = vmatprep.subr.mxu0 0.0
  %492 = vmatpush1.msra.mxu0 0.0
  %493 = vmatprep.subr.mxu0 0.0
  %494 = vmatpush1.msra.mxu0 0.0
  %495 = vmatprep.subr.mxu0 0.0
  %496 = vmatpush1.msra.mxu0 0.0
  %497 = vmatprep.subr.mxu0 0.0
  %498 = vmatpush1.msra.mxu0 0.0
  %499 = vmatprep.subr.mxu0 0.0
  %500 = vmatpush1.msra.mxu0 0.0
  %501 = vmatprep.subr.mxu0 0.0
  %502 = vmatpush1.msra.mxu0 0.0
  %503 = vmatprep.mubr.f32.mxu0 0.0
  %504 = vmatmul.mubr.f32.gmra.mrb[0].mxu0 %v423
  %v505 = vpop.f32.mrb[0].mxu0
  %v506 = vadd.f32 0.0, %v505
  %v507 = vpop.f32.mrb[0].mxu0
  %508 = vmatprep.mubr.f32.mxu0 0.0
  %509 = vmatmul.mubr.f32.gmra.mrb[0].mxu0 %v424
  %v510 = vpop.f32.mrb[0].mxu0
  %v511 = vadd.f32 0.0, %v510
  %v512 = vpop.f32.mrb[0].mxu0
  %513 = vmatprep.mubr.f32.mxu0 0.0
  %514 = vmatmul.mubr.f32.gmra.mrb[0].mxu0 %v425
  %v515 = vpop.f32.mrb[0].mxu0
  %v516 = vadd.f32 0.0, %v515
  %v517 = vpop.f32.mrb[0].mxu0
  %518 = vmatprep.mubr.f32.mxu0 0.0
  %519 = vmatmul.mubr.f32.gmra.mrb[0].mxu0 %v426
  %v520 = vpop.f32.mrb[0].mxu0
  %v521 = vadd.f32 0.0, %v520
  %v522 = vpop.f32.mrb[0].mxu0
  %523 = vmatprep.mubr.f32.mxu0 0.0
  %524 = vmatmul.mubr.f32.gmra.mrb[0].mxu0 %v427
  %v525 = vpop.f32.mrb[0].mxu0
  %v526 = vadd.f32 0.0, %v525
  %v527 = vpop.f32.mrb[0].mxu0
  %528 = vmatprep.mubr.f32.mxu0 0.0
  %529 = vmatmul.mubr.f32.gmra.mrb[0].mxu0 %v428
  %v530 = vpop.f32.mrb[0].mxu0
  %v531 = vadd.f32 0.0, %v530
  %v532 = vpop.f32.mrb[0].mxu0
  %533 = vmatprep.mubr.f32.mxu0 0.0
  %534 = vmatmul.mubr.f32.gmra.mrb[0].mxu0 %v429
  %v535 = vpop.f32.mrb[0].mxu0
  %v536 = vadd.f32 0.0, %v535
  %v537 = vpop.f32.mrb[0].mxu0
  %538 = vmatprep.mubr.f32.mxu0 0.0
  %539 = vmatmul.mubr.f32.gmra.mrb[0].mxu0 %v430
  %v540 = vpop.f32.mrb[0].mxu0
  %v541 = vadd.f32 0.0, %v540
  %v542 = vpop.f32.mrb[0].mxu0
  %543 = vmatprep.mubr.f32.mxu0 0.0
  %544 = vmatmul.mubr.f32.gmra.mrb[0].mxu0 %v431
  %v545 = vpop.f32.mrb[0].mxu0
  %v546 = vadd.f32 0.0, %v545
  %v547 = vpop.f32.mrb[0].mxu0
  %548 = vmatprep.mubr.f32.mxu0 0.0
  %549 = vmatmul.mubr.f32.gmra.mrb[0].mxu0 %v432
  %v550 = vpop.f32.mrb[0].mxu0
  %v551 = vadd.f32 0.0, %v550
  %v552 = vpop.f32.mrb[0].mxu0
  %553 = vmatprep.mubr.f32.mxu0 0.0
  %554 = vmatmul.mubr.f32.gmra.mrb[0].mxu0 %v433
  %v555 = vpop.f32.mrb[0].mxu0
  %v556 = vadd.f32 0.0, %v555
  %v557 = vpop.f32.mrb[0].mxu0
  %558 = vmatprep.mubr.f32.mxu0 0.0
  %559 = vmatmul.mubr.f32.gmra.mrb[0].mxu0 %v434
  %v560 = vpop.f32.mrb[0].mxu0
  %v561 = vadd.f32 0.0, %v560
  %v562 = vpop.f32.mrb[0].mxu0
  %563 = vmatprep.mubr.f32.mxu0 0.0
  %564 = vmatmul.mubr.f32.gmra.mrb[0].mxu0 %v435
  %v565 = vpop.f32.mrb[0].mxu0
  %v566 = vadd.f32 0.0, %v565
  %v567 = vpop.f32.mrb[0].mxu0
  %568 = vmatprep.mubr.f32.mxu0 0.0
  %569 = vmatmul.mubr.f32.gmra.mrb[0].mxu0 %v436
  %v570 = vpop.f32.mrb[0].mxu0
  %v571 = vadd.f32 0.0, %v570
  %v572 = vpop.f32.mrb[0].mxu0
  %573 = vmatprep.mubr.f32.mxu0 0.0
  %574 = vmatmul.mubr.f32.gmra.mrb[0].mxu0 %v437
  %v575 = vpop.f32.mrb[0].mxu0
  %v576 = vadd.f32 0.0, %v575
  %v577 = vpop.f32.mrb[0].mxu0
  %578 = vmatprep.mubr.f32.mxu0 0.0
  %579 = vmatmul.mubr.f32.gmra.mrb[0].mxu0 %v438
  %v580 = vpop.f32.mrb[0].mxu0
  %v581 = vadd.f32 0.0, %v580
  %v582 = vpop.f32.mrb[0].mxu0
  %583 = vdwg.mxu0
  %584 = vmatprep.subr.mxu0 0.0
  %585 = vmatpush1.msra.mxu0 %v169
  %586 = vmatprep.subr.mxu0 0.0
  %587 = vmatpush1.msra.mxu0 %v174
  %588 = vmatprep.subr.mxu0 0.0
  %589 = vmatpush1.msra.mxu0 %v179
  %590 = vmatprep.subr.mxu0 0.0
  %591 = vmatpush1.msra.mxu0 %v184
  %592 = vmatprep.subr.mxu0 0.0
  %593 = vmatpush1.msra.mxu0 %v189
  %594 = vmatprep.subr.mxu0 0.0
  %595 = vmatpush1.msra.mxu0 %v194
  %596 = vmatprep.subr.mxu0 0.0
  %597 = vmatpush1.msra.mxu0 %v199
  %598 = vmatprep.subr.mxu0 0.0
  %599 = vmatpush1.msra.mxu0 %v204
  %600 = vmatprep.subr.mxu0 0.0
  %601 = vmatpush1.msra.mxu0 %v209
  %602 = vmatprep.subr.mxu0 0.0
  %603 = vmatpush1.msra.mxu0 %v214
  %604 = vmatprep.subr.mxu0 0.0
  %605 = vmatpush1.msra.mxu0 %v219
  %606 = vmatprep.subr.mxu0 0.0
  %607 = vmatpush1.msra.mxu0 %v224
  %608 = vmatprep.subr.mxu0 0.0
  %609 = vmatpush1.msra.mxu0 %v229
  %610 = vmatprep.subr.mxu0 0.0
  %611 = vmatpush1.msra.mxu0 %v234
  %612 = vmatprep.subr.mxu0 0.0
  %613 = vmatpush1.msra.mxu0 %v239
  %614 = vmatprep.subr.mxu0 0.0
  %615 = vmatpush1.msra.mxu0 %v244
  %616 = vmatprep.subr.mxu0 0.0
  %617 = vmatpush1.msra.mxu0 0.0
  %618 = vmatprep.subr.mxu0 0.0
  %619 = vmatpush1.msra.mxu0 0.0
  %620 = vmatprep.subr.mxu0 0.0
  %621 = vmatpush1.msra.mxu0 0.0
  %622 = vmatprep.subr.mxu0 0.0
  %623 = vmatpush1.msra.mxu0 0.0
  %624 = vmatprep.subr.mxu0 0.0
  %625 = vmatpush1.msra.mxu0 0.0
  %626 = vmatprep.subr.mxu0 0.0
  %627 = vmatpush1.msra.mxu0 0.0
  %628 = vmatprep.subr.mxu0 0.0
  %629 = vmatpush1.msra.mxu0 0.0
  %630 = vmatprep.subr.mxu0 0.0
  %631 = vmatpush1.msra.mxu0 0.0
  %632 = vmatprep.subr.mxu0 0.0
  %633 = vmatpush1.msra.mxu0 0.0
  %634 = vmatprep.subr.mxu0 0.0
  %635 = vmatpush1.msra.mxu0 0.0
  %636 = vmatprep.subr.mxu0 0.0
  %637 = vmatpush1.msra.mxu0 0.0
  %638 = vmatprep.subr.mxu0 0.0
  %639 = vmatpush1.msra.mxu0 0.0
  %640 = vmatprep.subr.mxu0 0.0
  %641 = vmatpush1.msra.mxu0 0.0
  %642 = vmatprep.subr.mxu0 0.0
  %643 = vmatpush1.msra.mxu0 0.0
  %644 = vmatprep.subr.mxu0 0.0
  %645 = vmatpush1.msra.mxu0 0.0
  %646 = vmatprep.subr.mxu0 0.0
  %647 = vmatpush1.msra.mxu0 0.0
  %648 = vmatprep.mubr.f32.mxu0 0.0
  %649 = vmatmul.mubr.f32.gmra.mrb[0].mxu0 %v407
  %v650 = vpop.f32.mrb[0].mxu0
  %v651 = vadd.f32 %v506, %v650
  %v652 = vpop.f32.mrb[0].mxu0
  %653 = vmatprep.mubr.f32.mxu0 0.0
  %654 = vmatmul.mubr.f32.gmra.mrb[0].mxu0 %v408
  %v655 = vpop.f32.mrb[0].mxu0
  %v656 = vadd.f32 %v511, %v655
  %v657 = vpop.f32.mrb[0].mxu0
  %658 = vmatprep.mubr.f32.mxu0 0.0
  %659 = vmatmul.mubr.f32.gmra.mrb[0].mxu0 %v409
  %v660 = vpop.f32.mrb[0].mxu0
  %v661 = vadd.f32 %v516, %v660
  %v662 = vpop.f32.mrb[0].mxu0
  %663 = vmatprep.mubr.f32.mxu0 0.0
  %664 = vmatmul.mubr.f32.gmra.mrb[0].mxu0 %v410
  %v665 = vpop.f32.mrb[0].mxu0
  %v666 = vadd.f32 %v521, %v665
  %v667 = vpop.f32.mrb[0].mxu0
  %668 = vmatprep.mubr.f32.mxu0 0.0
  %669 = vmatmul.mubr.f32.gmra.mrb[0].mxu0 %v411
  %v670 = vpop.f32.mrb[0].mxu0
  %v671 = vadd.f32 %v526, %v670
  %v672 = vpop.f32.mrb[0].mxu0
  %673 = vmatprep.mubr.f32.mxu0 0.0
  %674 = vmatmul.mubr.f32.gmra.mrb[0].mxu0 %v412
  %v675 = vpop.f32.mrb[0].mxu0
  %v676 = vadd.f32 %v531, %v675
  %v677 = vpop.f32.mrb[0].mxu0
  %678 = vmatprep.mubr.f32.mxu0 0.0
  %679 = vmatmul.mubr.f32.gmra.mrb[0].mxu0 %v413
  %v680 = vpop.f32.mrb[0].mxu0
  %v681 = vadd.f32 %v536, %v680
  %v682 = vpop.f32.mrb[0].mxu0
  %683 = vmatprep.mubr.f32.mxu0 0.0
  %684 = vmatmul.mubr.f32.gmra.mrb[0].mxu0 %v414
  %v685 = vpop.f32.mrb[0].mxu0
  %v686 = vadd.f32 %v541, %v685
  %v687 = vpop.f32.mrb[0].mxu0
  %688 = vmatprep.mubr.f32.mxu0 0.0
  %689 = vmatmul.mubr.f32.gmra.mrb[0].mxu0 %v415
  %v690 = vpop.f32.mrb[0].mxu0
  %v691 = vadd.f32 %v546, %v690
  %v692 = vpop.f32.mrb[0].mxu0
  %693 = vmatprep.mubr.f32.mxu0 0.0
  %694 = vmatmul.mubr.f32.gmra.mrb[0].mxu0 %v416
  %v695 = vpop.f32.mrb[0].mxu0
  %v696 = vadd.f32 %v551, %v695
  %v697 = vpop.f32.mrb[0].mxu0
  %698 = vmatprep.mubr.f32.mxu0 0.0
  %699 = vmatmul.mubr.f32.gmra.mrb[0].mxu0 %v417
  %v700 = vpop.f32.mrb[0].mxu0
  %v701 = vadd.f32 %v556, %v700
  %v702 = vpop.f32.mrb[0].mxu0
  %703 = vmatprep.mubr.f32.mxu0 0.0
  %704 = vmatmul.mubr.f32.gmra.mrb[0].mxu0 %v418
  %v705 = vpop.f32.mrb[0].mxu0
  %v706 = vadd.f32 %v561, %v705
  %v707 = vpop.f32.mrb[0].mxu0
  %708 = vmatprep.mubr.f32.mxu0 0.0
  %709 = vmatmul.mubr.f32.gmra.mrb[0].mxu0 %v419
  %v710 = vpop.f32.mrb[0].mxu0
  %v711 = vadd.f32 %v566, %v710
  %v712 = vpop.f32.mrb[0].mxu0
  %713 = vmatprep.mubr.f32.mxu0 0.0
  %714 = vmatmul.mubr.f32.gmra.mrb[0].mxu0 %v420
  %v715 = vpop.f32.mrb[0].mxu0
  %v716 = vadd.f32 %v571, %v715
  %v717 = vpop.f32.mrb[0].mxu0
  %718 = vmatprep.mubr.f32.mxu0 0.0
  %719 = vmatmul.mubr.f32.gmra.mrb[0].mxu0 %v421
  %v720 = vpop.f32.mrb[0].mxu0
  %v721 = vadd.f32 %v576, %v720
  %v722 = vpop.f32.mrb[0].mxu0
  %723 = vmatprep.mubr.f32.mxu0 0.0
  %724 = vmatmul.mubr.f32.gmra.mrb[0].mxu0 %v422
  %v725 = vpop.f32.mrb[0].mxu0
  %v726 = vadd.f32 %v581, %v725
  %v727 = vpop.f32.mrb[0].mxu0
  %728 = vdwg.mxu0
  %v729 = vxor.u32 %v651, 2147483648
  %v730 = vxor.u32 %v656, 2147483648
  %v731 = vxor.u32 %v661, 2147483648
  %v732 = vxor.u32 %v666, 2147483648
  %v733 = vxor.u32 %v671, 2147483648
  %v734 = vxor.u32 %v676, 2147483648
  %v735 = vxor.u32 %v681, 2147483648
  %v736 = vxor.u32 %v686, 2147483648
  %v737 = vxor.u32 %v691, 2147483648
  %v738 = vxor.u32 %v696, 2147483648
  %v739 = vxor.u32 %v701, 2147483648
  %v740 = vxor.u32 %v706, 2147483648
  %v741 = vxor.u32 %v711, 2147483648
  %v742 = vxor.u32 %v716, 2147483648
  %v743 = vxor.u32 %v721, 2147483648
  %v744 = vxor.u32 %v726, 2147483648
  %v745 = vmul.f32 %v729, 1.442695
  %v746 = vpow.pop %v745
  %v747 = vmul.f32 %v730, 1.442695
  %v748 = vpow.pop %v747
  %v749 = vmul.f32 %v731, 1.442695
  %v750 = vpow.pop %v749
  %v751 = vmul.f32 %v732, 1.442695
  %v752 = vpow.pop %v751
  %v753 = vmul.f32 %v733, 1.442695
  %v754 = vpow.pop %v753
  %v755 = vmul.f32 %v734, 1.442695
  %v756 = vpow.pop %v755
  %v757 = vmul.f32 %v735, 1.442695
  %v758 = vpow.pop %v757
  %v759 = vmul.f32 %v736, 1.442695
  %v760 = vpow.pop %v759
  %v761 = vmul.f32 %v737, 1.442695
  %v762 = vpow.pop %v761
  %v763 = vmul.f32 %v738, 1.442695
  %v764 = vpow.pop %v763
  %v765 = vmul.f32 %v739, 1.442695
  %v766 = vpow.pop %v765
  %v767 = vmul.f32 %v740, 1.442695
  %v768 = vpow.pop %v767
  %v769 = vmul.f32 %v741, 1.442695
  %v770 = vpow.pop %v769
  %v771 = vmul.f32 %v742, 1.442695
  %v772 = vpow.pop %v771
  %v773 = vmul.f32 %v743, 1.442695
  %v774 = vpow.pop %v773
  %v775 = vmul.f32 %v744, 1.442695
  %v776 = vpow.pop %v775
  %v777 = vadd.f32 %v746, 1.0
  %v778 = vadd.f32 %v748, 1.0
  %v779 = vadd.f32 %v750, 1.0
  %v780 = vadd.f32 %v752, 1.0
  %v781 = vadd.f32 %v754, 1.0
  %v782 = vadd.f32 %v756, 1.0
  %v783 = vadd.f32 %v758, 1.0
  %v784 = vadd.f32 %v760, 1.0
  %v785 = vadd.f32 %v762, 1.0
  %v786 = vadd.f32 %v764, 1.0
  %v787 = vadd.f32 %v766, 1.0
  %v788 = vadd.f32 %v768, 1.0
  %v789 = vadd.f32 %v770, 1.0
  %v790 = vadd.f32 %v772, 1.0
  %v791 = vadd.f32 %v774, 1.0
  %v792 = vadd.f32 %v776, 1.0
  %v793 = vrcp.pop %v777
  %v794 = vmul.f32 1.0, %v793
  %v795 = vrcp.pop %v778
  %v796 = vmul.f32 1.0, %v795
  %v797 = vrcp.pop %v779
  %v798 = vmul.f32 1.0, %v797
  %v799 = vrcp.pop %v780
  %v800 = vmul.f32 1.0, %v799
  %v801 = vrcp.pop %v781
  %v802 = vmul.f32 1.0, %v801
  %v803 = vrcp.pop %v782
  %v804 = vmul.f32 1.0, %v803
  %v805 = vrcp.pop %v783
  %v806 = vmul.f32 1.0, %v805
  %v807 = vrcp.pop %v784
  %v808 = vmul.f32 1.0, %v807
  %v809 = vrcp.pop %v785
  %v810 = vmul.f32 1.0, %v809
  %v811 = vrcp.pop %v786
  %v812 = vmul.f32 1.0, %v811
  %v813 = vrcp.pop %v787
  %v814 = vmul.f32 1.0, %v813
  %v815 = vrcp.pop %v788
  %v816 = vmul.f32 1.0, %v815
  %v817 = vrcp.pop %v789
  %v818 = vmul.f32 1.0, %v817
  %v819 = vrcp.pop %v790
  %v820 = vmul.f32 1.0, %v819
  %v821 = vrcp.pop %v791
  %v822 = vmul.f32 1.0, %v821
  %v823 = vrcp.pop %v792
  %v824 = vmul.f32 1.0, %v823
  %825 = vst [vmem:[%s10] sm:$0xff] %v794
  %826 = vst [vmem:[%s10 + $0x8] sm:$0xff] %v796
  %827 = vst [vmem:[%s10 + $0x10] sm:$0xff] %v798
  %828 = vst [vmem:[%s10 + $0x18] sm:$0xff] %v800
  %829 = vst [vmem:[%s10 + $0x20] sm:$0xff] %v802
  %830 = vst [vmem:[%s10 + $0x28] sm:$0xff] %v804
  %831 = vst [vmem:[%s10 + $0x30] sm:$0xff] %v806
  %832 = vst [vmem:[%s10 + $0x38] sm:$0xff] %v808
  %833 = vst [vmem:[%s10 + $0x40] sm:$0xff] %v810
  %834 = vst [vmem:[%s10 + $0x48] sm:$0xff] %v812
  %835 = vst [vmem:[%s10 + $0x50] sm:$0xff] %v814
  %836 = vst [vmem:[%s10 + $0x58] sm:$0xff] %v816
  %837 = vst [vmem:[%s10 + $0x60] sm:$0xff] %v818
  %838 = vst [vmem:[%s10 + $0x68] sm:$0xff] %v820
  %839 = vst [vmem:[%s10 + $0x70] sm:$0xff] %v822
  %840 = vst [vmem:[%s10 + $0x78] sm:$0xff] %v824
  %v841 = vld [vmem:[%s5] sm:$0xff]
  %v842 = vld [vmem:[%s5 + $0x8] sm:$0xff]
  %v843 = vld [vmem:[%s5 + $0x10] sm:$0xff]
  %v844 = vld [vmem:[%s5 + $0x18] sm:$0xff]
  %v845 = vld [vmem:[%s5 + $0x20] sm:$0xff]
  %v846 = vld [vmem:[%s5 + $0x28] sm:$0xff]
  %v847 = vld [vmem:[%s5 + $0x30] sm:$0xff]
  %v848 = vld [vmem:[%s5 + $0x38] sm:$0xff]
  %v849 = vld [vmem:[%s5 + $0x40] sm:$0xff]
  %v850 = vld [vmem:[%s5 + $0x48] sm:$0xff]
  %v851 = vld [vmem:[%s5 + $0x50] sm:$0xff]
  %v852 = vld [vmem:[%s5 + $0x58] sm:$0xff]
  %v853 = vld [vmem:[%s5 + $0x60] sm:$0xff]
  %v854 = vld [vmem:[%s5 + $0x68] sm:$0xff]
  %v855 = vld [vmem:[%s5 + $0x70] sm:$0xff]
  %v856 = vld [vmem:[%s5 + $0x78] sm:$0xff]
  %v857 = vld [vmem:[%s6] sm:$0xff]
  %v858 = vld [vmem:[%s6 + $0x8] sm:$0xff]
  %v859 = vld [vmem:[%s6 + $0x10] sm:$0xff]
  %v860 = vld [vmem:[%s6 + $0x18] sm:$0xff]
  %v861 = vld [vmem:[%s6 + $0x20] sm:$0xff]
  %v862 = vld [vmem:[%s6 + $0x28] sm:$0xff]
  %v863 = vld [vmem:[%s6 + $0x30] sm:$0xff]
  %v864 = vld [vmem:[%s6 + $0x38] sm:$0xff]
  %v865 = vld [vmem:[%s6 + $0x40] sm:$0xff]
  %v866 = vld [vmem:[%s6 + $0x48] sm:$0xff]
  %v867 = vld [vmem:[%s6 + $0x50] sm:$0xff]
  %v868 = vld [vmem:[%s6 + $0x58] sm:$0xff]
  %v869 = vld [vmem:[%s6 + $0x60] sm:$0xff]
  %v870 = vld [vmem:[%s6 + $0x68] sm:$0xff]
  %v871 = vld [vmem:[%s6 + $0x70] sm:$0xff]
  %v872 = vld [vmem:[%s6 + $0x78] sm:$0xff]
  %v873 = vadd.f32 %v841, %v857
  %v874 = vadd.f32 %v842, %v858
  %v875 = vadd.f32 %v843, %v859
  %v876 = vadd.f32 %v844, %v860
  %v877 = vadd.f32 %v845, %v861
  %v878 = vadd.f32 %v846, %v862
  %v879 = vadd.f32 %v847, %v863
  %v880 = vadd.f32 %v848, %v864
  %v881 = vadd.f32 %v849, %v865
  %v882 = vadd.f32 %v850, %v866
  %v883 = vadd.f32 %v851, %v867
  %v884 = vadd.f32 %v852, %v868
  %v885 = vadd.f32 %v853, %v869
  %v886 = vadd.f32 %v854, %v870
  %v887 = vadd.f32 %v855, %v871
  %v888 = vadd.f32 %v856, %v872
  %v889 = vld [vmem:[%s4] sm:$0xff]
  %v890 = vld [vmem:[%s4 + $0x8] sm:$0xff]
  %v891 = vld [vmem:[%s4 + $0x10] sm:$0xff]
  %v892 = vld [vmem:[%s4 + $0x18] sm:$0xff]
  %v893 = vld [vmem:[%s4 + $0x20] sm:$0xff]
  %v894 = vld [vmem:[%s4 + $0x28] sm:$0xff]
  %v895 = vld [vmem:[%s4 + $0x30] sm:$0xff]
  %v896 = vld [vmem:[%s4 + $0x38] sm:$0xff]
  %v897 = vld [vmem:[%s4 + $0x40] sm:$0xff]
  %v898 = vld [vmem:[%s4 + $0x48] sm:$0xff]
  %v899 = vld [vmem:[%s4 + $0x50] sm:$0xff]
  %v900 = vld [vmem:[%s4 + $0x58] sm:$0xff]
  %v901 = vld [vmem:[%s4 + $0x60] sm:$0xff]
  %v902 = vld [vmem:[%s4 + $0x68] sm:$0xff]
  %v903 = vld [vmem:[%s4 + $0x70] sm:$0xff]
  %v904 = vld [vmem:[%s4 + $0x78] sm:$0xff]
  %905 = vmatprep.subr.mxu0 0.0
  %906 = vmatpush1.msra.mxu0 %v249
  %907 = vmatprep.subr.mxu0 0.0
  %908 = vmatpush1.msra.mxu0 %v254
  %909 = vmatprep.subr.mxu0 0.0
  %910 = vmatpush1.msra.mxu0 %v259
  %911 = vmatprep.subr.mxu0 0.0
  %912 = vmatpush1.msra.mxu0 %v264
  %913 = vmatprep.subr.mxu0 0.0
  %914 = vmatpush1.msra.mxu0 %v269
  %915 = vmatprep.subr.mxu0 0.0
  %916 = vmatpush1.msra.mxu0 %v274
  %917 = vmatprep.subr.mxu0 0.0
  %918 = vmatpush1.msra.mxu0 %v279
  %919 = vmatprep.subr.mxu0 0.0
  %920 = vmatpush1.msra.mxu0 %v284
  %921 = vmatprep.subr.mxu0 0.0
  %922 = vmatpush1.msra.mxu0 %v289
  %923 = vmatprep.subr.mxu0 0.0
  %924 = vmatpush1.msra.mxu0 %v294
  %925 = vmatprep.subr.mxu0 0.0
  %926 = vmatpush1.msra.mxu0 %v299
  %927 = vmatprep.subr.mxu0 0.0
  %928 = vmatpush1.msra.mxu0 %v304
  %929 = vmatprep.subr.mxu0 0.0
  %930 = vmatpush1.msra.mxu0 %v309
  %931 = vmatprep.subr.mxu0 0.0
  %932 = vmatpush1.msra.mxu0 %v314
  %933 = vmatprep.subr.mxu0 0.0
  %934 = vmatpush1.msra.mxu0 %v319
  %935 = vmatprep.subr.mxu0 0.0
  %936 = vmatpush1.msra.mxu0 %v324
  %937 = vmatprep.subr.mxu0 0.0
  %938 = vmatpush1.msra.mxu0 0.0
  %939 = vmatprep.subr.mxu0 0.0
  %940 = vmatpush1.msra.mxu0 0.0
  %941 = vmatprep.subr.mxu0 0.0
  %942 = vmatpush1.msra.mxu0 0.0
  %943 = vmatprep.subr.mxu0 0.0
  %944 = vmatpush1.msra.mxu0 0.0
  %945 = vmatprep.subr.mxu0 0.0
  %946 = vmatpush1.msra.mxu0 0.0
  %947 = vmatprep.subr.mxu0 0.0
  %948 = vmatpush1.msra.mxu0 0.0
  %949 = vmatprep.subr.mxu0 0.0
  %950 = vmatpush1.msra.mxu0 0.0
  %951 = vmatprep.subr.mxu0 0.0
  %952 = vmatpush1.msra.mxu0 0.0
  %953 = vmatprep.subr.mxu0 0.0
  %954 = vmatpush1.msra.mxu0 0.0
  %955 = vmatprep.subr.mxu0 0.0
  %956 = vmatpush1.msra.mxu0 0.0
  %957 = vmatprep.subr.mxu0 0.0
  %958 = vmatpush1.msra.mxu0 0.0
  %959 = vmatprep.subr.mxu0 0.0
  %960 = vmatpush1.msra.mxu0 0.0
  %961 = vmatprep.subr.mxu0 0.0
  %962 = vmatpush1.msra.mxu0 0.0
  %963 = vmatprep.subr.mxu0 0.0
  %964 = vmatpush1.msra.mxu0 0.0
  %965 = vmatprep.subr.mxu0 0.0
  %966 = vmatpush1.msra.mxu0 0.0
  %967 = vmatprep.subr.mxu0 0.0
  %968 = vmatpush1.msra.mxu0 0.0
  %969 = vmatprep.mubr.f32.mxu0 0.0
  %970 = vmatmul.mubr.f32.gmra.mrb[0].mxu0 %v873
  %v971 = vpop.f32.mrb[0].mxu0
  %v972 = vadd.f32 0.0, %v971
  %v973 = vpop.f32.mrb[0].mxu0
  %974 = vmatprep.mubr.f32.mxu0 0.0
  %975 = vmatmul.mubr.f32.gmra.mrb[0].mxu0 %v874
  %v976 = vpop.f32.mrb[0].mxu0
  %v977 = vadd.f32 0.0, %v976
  %v978 = vpop.f32.mrb[0].mxu0
  %979 = vmatprep.mubr.f32.mxu0 0.0
  %980 = vmatmul.mubr.f32.gmra.mrb[0].mxu0 %v875
  %v981 = vpop.f32.mrb[0].mxu0
  %v982 = vadd.f32 0.0, %v981
  %v983 = vpop.f32.mrb[0].mxu0
  %984 = vmatprep.mubr.f32.mxu0 0.0
  %985 = vmatmul.mubr.f32.gmra.mrb[0].mxu0 %v876
  %v986 = vpop.f32.mrb[0].mxu0
  %v987 = vadd.f32 0.0, %v986
  %v988 = vpop.f32.mrb[0].mxu0
  %989 = vmatprep.mubr.f32.mxu0 0.0
  %990 = vmatmul.mubr.f32.gmra.mrb[0].mxu0 %v877
  %v991 = vpop.f32.mrb[0].mxu0
  %v992 = vadd.f32 0.0, %v991
  %v993 = vpop.f32.mrb[0].mxu0
  %994 = vmatprep.mubr.f32.mxu0 0.0
  %995 = vmatmul.mubr.f32.gmra.mrb[0].mxu0 %v878
  %v996 = vpop.f32.mrb[0].mxu0
  %v997 = vadd.f32 0.0, %v996
  %v998 = vpop.f32.mrb[0].mxu0
  %999 = vmatprep.mubr.f32.mxu0 0.0
  %1000 = vmatmul.mubr.f32.gmra.mrb[0].mxu0 %v879
  %v1001 = vpop.f32.mrb[0].mxu0
  %v1002 = vadd.f32 0.0, %v1001
  %v1003 = vpop.f32.mrb[0].mxu0
  %1004 = vmatprep.mubr.f32.mxu0 0.0
  %1005 = vmatmul.mubr.f32.gmra.mrb[0].mxu0 %v880
  %v1006 = vpop.f32.mrb[0].mxu0
  %v1007 = vadd.f32 0.0, %v1006
  %v1008 = vpop.f32.mrb[0].mxu0
  %1009 = vmatprep.mubr.f32.mxu0 0.0
  %1010 = vmatmul.mubr.f32.gmra.mrb[0].mxu0 %v881
  %v1011 = vpop.f32.mrb[0].mxu0
  %v1012 = vadd.f32 0.0, %v1011
  %v1013 = vpop.f32.mrb[0].mxu0
  %1014 = vmatprep.mubr.f32.mxu0 0.0
  %1015 = vmatmul.mubr.f32.gmra.mrb[0].mxu0 %v882
  %v1016 = vpop.f32.mrb[0].mxu0
  %v1017 = vadd.f32 0.0, %v1016
  %v1018 = vpop.f32.mrb[0].mxu0
  %1019 = vmatprep.mubr.f32.mxu0 0.0
  %1020 = vmatmul.mubr.f32.gmra.mrb[0].mxu0 %v883
  %v1021 = vpop.f32.mrb[0].mxu0
  %v1022 = vadd.f32 0.0, %v1021
  %v1023 = vpop.f32.mrb[0].mxu0
  %1024 = vmatprep.mubr.f32.mxu0 0.0
  %1025 = vmatmul.mubr.f32.gmra.mrb[0].mxu0 %v884
  %v1026 = vpop.f32.mrb[0].mxu0
  %v1027 = vadd.f32 0.0, %v1026
  %v1028 = vpop.f32.mrb[0].mxu0
  %1029 = vmatprep.mubr.f32.mxu0 0.0
  %1030 = vmatmul.mubr.f32.gmra.mrb[0].mxu0 %v885
  %v1031 = vpop.f32.mrb[0].mxu0
  %v1032 = vadd.f32 0.0, %v1031
  %v1033 = vpop.f32.mrb[0].mxu0
  %1034 = vmatprep.mubr.f32.mxu0 0.0
  %1035 = vmatmul.mubr.f32.gmra.mrb[0].mxu0 %v886
  %v1036 = vpop.f32.mrb[0].mxu0
  %v1037 = vadd.f32 0.0, %v1036
  %v1038 = vpop.f32.mrb[0].mxu0
  %1039 = vmatprep.mubr.f32.mxu0 0.0
  %1040 = vmatmul.mubr.f32.gmra.mrb[0].mxu0 %v887
  %v1041 = vpop.f32.mrb[0].mxu0
  %v1042 = vadd.f32 0.0, %v1041
  %v1043 = vpop.f32.mrb[0].mxu0
  %1044 = vmatprep.mubr.f32.mxu0 0.0
  %1045 = vmatmul.mubr.f32.gmra.mrb[0].mxu0 %v888
  %v1046 = vpop.f32.mrb[0].mxu0
  %v1047 = vadd.f32 0.0, %v1046
  %v1048 = vpop.f32.mrb[0].mxu0
  %1049 = vdwg.mxu0
  %1050 = vmatprep.subr.mxu0 0.0
  %1051 = vmatpush1.msra.mxu0 %v169
  %1052 = vmatprep.subr.mxu0 0.0
  %1053 = vmatpush1.msra.mxu0 %v174
  %1054 = vmatprep.subr.mxu0 0.0
  %1055 = vmatpush1.msra.mxu0 %v179
  %1056 = vmatprep.subr.mxu0 0.0
  %1057 = vmatpush1.msra.mxu0 %v184
  %1058 = vmatprep.subr.mxu0 0.0
  %1059 = vmatpush1.msra.mxu0 %v189
  %1060 = vmatprep.subr.mxu0 0.0
  %1061 = vmatpush1.msra.mxu0 %v194
  %1062 = vmatprep.subr.mxu0 0.0
  %1063 = vmatpush1.msra.mxu0 %v199
  %1064 = vmatprep.subr.mxu0 0.0
  %1065 = vmatpush1.msra.mxu0 %v204
  %1066 = vmatprep.subr.mxu0 0.0
  %1067 = vmatpush1.msra.mxu0 %v209
  %1068 = vmatprep.subr.mxu0 0.0
  %1069 = vmatpush1.msra.mxu0 %v214
  %1070 = vmatprep.subr.mxu0 0.0
  %1071 = vmatpush1.msra.mxu0 %v219
  %1072 = vmatprep.subr.mxu0 0.0
  %1073 = vmatpush1.msra.mxu0 %v224
  %1074 = vmatprep.subr.mxu0 0.0
  %1075 = vmatpush1.msra.mxu0 %v229
  %1076 = vmatprep.subr.mxu0 0.0
  %1077 = vmatpush1.msra.mxu0 %v234
  %1078 = vmatprep.subr.mxu0 0.0
  %1079 = vmatpush1.msra.mxu0 %v239
  %1080 = vmatprep.subr.mxu0 0.0
  %1081 = vmatpush1.msra.mxu0 %v244
  %1082 = vmatprep.subr.mxu0 0.0
  %1083 = vmatpush1.msra.mxu0 0.0
  %1084 = vmatprep.subr.mxu0 0.0
  %1085 = vmatpush1.msra.mxu0 0.0
  %1086 = vmatprep.subr.mxu0 0.0
  %1087 = vmatpush1.msra.mxu0 0.0
  %1088 = vmatprep.subr.mxu0 0.0
  %1089 = vmatpush1.msra.mxu0 0.0
  %1090 = vmatprep.subr.mxu0 0.0
  %1091 = vmatpush1.msra.mxu0 0.0
  %1092 = vmatprep.subr.mxu0 0.0
  %1093 = vmatpush1.msra.mxu0 0.0
  %1094 = vmatprep.subr.mxu0 0.0
  %1095 = vmatpush1.msra.mxu0 0.0
  %1096 = vmatprep.subr.mxu0 0.0
  %1097 = vmatpush1.msra.mxu0 0.0
  %1098 = vmatprep.subr.mxu0 0.0
  %1099 = vmatpush1.msra.mxu0 0.0
  %1100 = vmatprep.subr.mxu0 0.0
  %1101 = vmatpush1.msra.mxu0 0.0
  %1102 = vmatprep.subr.mxu0 0.0
  %1103 = vmatpush1.msra.mxu0 0.0
  %1104 = vmatprep.subr.mxu0 0.0
  %1105 = vmatpush1.msra.mxu0 0.0
  %1106 = vmatprep.subr.mxu0 0.0
  %1107 = vmatpush1.msra.mxu0 0.0
  %1108 = vmatprep.subr.mxu0 0.0
  %1109 = vmatpush1.msra.mxu0 0.0
  %1110 = vmatprep.subr.mxu0 0.0
  %1111 = vmatpush1.msra.mxu0 0.0
  %1112 = vmatprep.subr.mxu0 0.0
  %1113 = vmatpush1.msra.mxu0 0.0
  %1114 = vmatprep.mubr.f32.mxu0 0.0
  %1115 = vmatmul.mubr.f32.gmra.mrb[0].mxu0 %v889
  %v1116 = vpop.f32.mrb[0].mxu0
  %v1117 = vadd.f32 %v972, %v1116
  %v1118 = vpop.f32.mrb[0].mxu0
  %1119 = vmatprep.mubr.f32.mxu0 0.0
  %1120 = vmatmul.mubr.f32.gmra.mrb[0].mxu0 %v890
  %v1121 = vpop.f32.mrb[0].mxu0
  %v1122 = vadd.f32 %v977, %v1121
  %v1123 = vpop.f32.mrb[0].mxu0
  %1124 = vmatprep.mubr.f32.mxu0 0.0
  %1125 = vmatmul.mubr.f32.gmra.mrb[0].mxu0 %v891
  %v1126 = vpop.f32.mrb[0].mxu0
  %v1127 = vadd.f32 %v982, %v1126
  %v1128 = vpop.f32.mrb[0].mxu0
  %1129 = vmatprep.mubr.f32.mxu0 0.0
  %1130 = vmatmul.mubr.f32.gmra.mrb[0].mxu0 %v892
  %v1131 = vpop.f32.mrb[0].mxu0
  %v1132 = vadd.f32 %v987, %v1131
  %v1133 = vpop.f32.mrb[0].mxu0
  %1134 = vmatprep.mubr.f32.mxu0 0.0
  %1135 = vmatmul.mubr.f32.gmra.mrb[0].mxu0 %v893
  %v1136 = vpop.f32.mrb[0].mxu0
  %v1137 = vadd.f32 %v992, %v1136
  %v1138 = vpop.f32.mrb[0].mxu0
  %1139 = vmatprep.mubr.f32.mxu0 0.0
  %1140 = vmatmul.mubr.f32.gmra.mrb[0].mxu0 %v894
  %v1141 = vpop.f32.mrb[0].mxu0
  %v1142 = vadd.f32 %v997, %v1141
  %v1143 = vpop.f32.mrb[0].mxu0
  %1144 = vmatprep.mubr.f32.mxu0 0.0
  %1145 = vmatmul.mubr.f32.gmra.mrb[0].mxu0 %v895
  %v1146 = vpop.f32.mrb[0].mxu0
  %v1147 = vadd.f32 %v1002, %v1146
  %v1148 = vpop.f32.mrb[0].mxu0
  %1149 = vmatprep.mubr.f32.mxu0 0.0
  %1150 = vmatmul.mubr.f32.gmra.mrb[0].mxu0 %v896
  %v1151 = vpop.f32.mrb[0].mxu0
  %v1152 = vadd.f32 %v1007, %v1151
  %v1153 = vpop.f32.mrb[0].mxu0
  %1154 = vmatprep.mubr.f32.mxu0 0.0
  %1155 = vmatmul.mubr.f32.gmra.mrb[0].mxu0 %v897
  %v1156 = vpop.f32.mrb[0].mxu0
  %v1157 = vadd.f32 %v1012, %v1156
  %v1158 = vpop.f32.mrb[0].mxu0
  %1159 = vmatprep.mubr.f32.mxu0 0.0
  %1160 = vmatmul.mubr.f32.gmra.mrb[0].mxu0 %v898
  %v1161 = vpop.f32.mrb[0].mxu0
  %v1162 = vadd.f32 %v1017, %v1161
  %v1163 = vpop.f32.mrb[0].mxu0
  %1164 = vmatprep.mubr.f32.mxu0 0.0
  %1165 = vmatmul.mubr.f32.gmra.mrb[0].mxu0 %v899
  %v1166 = vpop.f32.mrb[0].mxu0
  %v1167 = vadd.f32 %v1022, %v1166
  %v1168 = vpop.f32.mrb[0].mxu0
  %1169 = vmatprep.mubr.f32.mxu0 0.0
  %1170 = vmatmul.mubr.f32.gmra.mrb[0].mxu0 %v900
  %v1171 = vpop.f32.mrb[0].mxu0
  %v1172 = vadd.f32 %v1027, %v1171
  %v1173 = vpop.f32.mrb[0].mxu0
  %1174 = vmatprep.mubr.f32.mxu0 0.0
  %1175 = vmatmul.mubr.f32.gmra.mrb[0].mxu0 %v901
  %v1176 = vpop.f32.mrb[0].mxu0
  %v1177 = vadd.f32 %v1032, %v1176
  %v1178 = vpop.f32.mrb[0].mxu0
  %1179 = vmatprep.mubr.f32.mxu0 0.0
  %1180 = vmatmul.mubr.f32.gmra.mrb[0].mxu0 %v902
  %v1181 = vpop.f32.mrb[0].mxu0
  %v1182 = vadd.f32 %v1037, %v1181
  %v1183 = vpop.f32.mrb[0].mxu0
  %1184 = vmatprep.mubr.f32.mxu0 0.0
  %1185 = vmatmul.mubr.f32.gmra.mrb[0].mxu0 %v903
  %v1186 = vpop.f32.mrb[0].mxu0
  %v1187 = vadd.f32 %v1042, %v1186
  %v1188 = vpop.f32.mrb[0].mxu0
  %1189 = vmatprep.mubr.f32.mxu0 0.0
  %1190 = vmatmul.mubr.f32.gmra.mrb[0].mxu0 %v904
  %v1191 = vpop.f32.mrb[0].mxu0
  %v1192 = vadd.f32 %v1047, %v1191
  %v1193 = vpop.f32.mrb[0].mxu0
  %1194 = vdwg.mxu0
  %v1195 = vld [vmem:[%s7] sm:$0xff]
  %v1196 = vld [vmem:[%s7 + $0x8] sm:$0xff]
  %v1197 = vld [vmem:[%s7 + $0x10] sm:$0xff]
  %v1198 = vld [vmem:[%s7 + $0x18] sm:$0xff]
  %v1199 = vld [vmem:[%s7 + $0x20] sm:$0xff]
  %v1200 = vld [vmem:[%s7 + $0x28] sm:$0xff]
  %v1201 = vld [vmem:[%s7 + $0x30] sm:$0xff]
  %v1202 = vld [vmem:[%s7 + $0x38] sm:$0xff]
  %v1203 = vld [vmem:[%s7 + $0x40] sm:$0xff]
  %v1204 = vld [vmem:[%s7 + $0x48] sm:$0xff]
  %v1205 = vld [vmem:[%s7 + $0x50] sm:$0xff]
  %v1206 = vld [vmem:[%s7 + $0x58] sm:$0xff]
  %v1207 = vld [vmem:[%s7 + $0x60] sm:$0xff]
  %v1208 = vld [vmem:[%s7 + $0x68] sm:$0xff]
  %v1209 = vld [vmem:[%s7 + $0x70] sm:$0xff]
  %v1210 = vld [vmem:[%s7 + $0x78] sm:$0xff]
  %1211 = vmatprep.subr.mxu0 0.0
  %1212 = vmatpush1.msra.mxu0 %v329
  %1213 = vmatprep.subr.mxu0 0.0
  %1214 = vmatpush1.msra.mxu0 %v334
  %1215 = vmatprep.subr.mxu0 0.0
  %1216 = vmatpush1.msra.mxu0 %v339
  %1217 = vmatprep.subr.mxu0 0.0
  %1218 = vmatpush1.msra.mxu0 %v344
  %1219 = vmatprep.subr.mxu0 0.0
  %1220 = vmatpush1.msra.mxu0 %v349
  %1221 = vmatprep.subr.mxu0 0.0
  %1222 = vmatpush1.msra.mxu0 %v354
  %1223 = vmatprep.subr.mxu0 0.0
  %1224 = vmatpush1.msra.mxu0 %v359
  %1225 = vmatprep.subr.mxu0 0.0
  %1226 = vmatpush1.msra.mxu0 %v364
  %1227 = vmatprep.subr.mxu0 0.0
  %1228 = vmatpush1.msra.mxu0 %v369
  %1229 = vmatprep.subr.mxu0 0.0
  %1230 = vmatpush1.msra.mxu0 %v374
  %1231 = vmatprep.subr.mxu0 0.0
  %1232 = vmatpush1.msra.mxu0 %v379
  %1233 = vmatprep.subr.mxu0 0.0
  %1234 = vmatpush1.msra.mxu0 %v384
  %1235 = vmatprep.subr.mxu0 0.0
  %1236 = vmatpush1.msra.mxu0 %v389
  %1237 = vmatprep.subr.mxu0 0.0
  %1238 = vmatpush1.msra.mxu0 %v394
  %1239 = vmatprep.subr.mxu0 0.0
  %1240 = vmatpush1.msra.mxu0 %v399
  %1241 = vmatprep.subr.mxu0 0.0
  %1242 = vmatpush1.msra.mxu0 %v404
  %1243 = vmatprep.subr.mxu0 0.0
  %1244 = vmatpush1.msra.mxu0 0.0
  %1245 = vmatprep.subr.mxu0 0.0
  %1246 = vmatpush1.msra.mxu0 0.0
  %1247 = vmatprep.subr.mxu0 0.0
  %1248 = vmatpush1.msra.mxu0 0.0
  %1249 = vmatprep.subr.mxu0 0.0
  %1250 = vmatpush1.msra.mxu0 0.0
  %1251 = vmatprep.subr.mxu0 0.0
  %1252 = vmatpush1.msra.mxu0 0.0
  %1253 = vmatprep.subr.mxu0 0.0
  %1254 = vmatpush1.msra.mxu0 0.0
  %1255 = vmatprep.subr.mxu0 0.0
  %1256 = vmatpush1.msra.mxu0 0.0
  %1257 = vmatprep.subr.mxu0 0.0
  %1258 = vmatpush1.msra.mxu0 0.0
  %1259 = vmatprep.subr.mxu0 0.0
  %1260 = vmatpush1.msra.mxu0 0.0
  %1261 = vmatprep.subr.mxu0 0.0
  %1262 = vmatpush1.msra.mxu0 0.0
  %1263 = vmatprep.subr.mxu0 0.0
  %1264 = vmatpush1.msra.mxu0 0.0
  %1265 = vmatprep.subr.mxu0 0.0
  %1266 = vmatpush1.msra.mxu0 0.0
  %1267 = vmatprep.subr.mxu0 0.0
  %1268 = vmatpush1.msra.mxu0 0.0
  %1269 = vmatprep.subr.mxu0 0.0
  %1270 = vmatpush1.msra.mxu0 0.0
  %1271 = vmatprep.subr.mxu0 0.0
  %1272 = vmatpush1.msra.mxu0 0.0
  %1273 = vmatprep.subr.mxu0 0.0
  %1274 = vmatpush1.msra.mxu0 0.0
  %1275 = vmatprep.mubr.f32.mxu0 0.0
  %1276 = vmatmul.mubr.f32.gmra.mrb[0].mxu0 %v1195
  %v1277 = vpop.f32.mrb[0].mxu0
  %v1278 = vadd.f32 0.0, %v1277
  %v1279 = vpop.f32.mrb[0].mxu0
  %1280 = vmatprep.mubr.f32.mxu0 0.0
  %1281 = vmatmul.mubr.f32.gmra.mrb[0].mxu0 %v1196
  %v1282 = vpop.f32.mrb[0].mxu0
  %v1283 = vadd.f32 0.0, %v1282
  %v1284 = vpop.f32.mrb[0].mxu0
  %1285 = vmatprep.mubr.f32.mxu0 0.0
  %1286 = vmatmul.mubr.f32.gmra.mrb[0].mxu0 %v1197
  %v1287 = vpop.f32.mrb[0].mxu0
  %v1288 = vadd.f32 0.0, %v1287
  %v1289 = vpop.f32.mrb[0].mxu0
  %1290 = vmatprep.mubr.f32.mxu0 0.0
  %1291 = vmatmul.mubr.f32.gmra.mrb[0].mxu0 %v1198
  %v1292 = vpop.f32.mrb[0].mxu0
  %v1293 = vadd.f32 0.0, %v1292
  %v1294 = vpop.f32.mrb[0].mxu0
  %1295 = vmatprep.mubr.f32.mxu0 0.0
  %1296 = vmatmul.mubr.f32.gmra.mrb[0].mxu0 %v1199
  %v1297 = vpop.f32.mrb[0].mxu0
  %v1298 = vadd.f32 0.0, %v1297
  %v1299 = vpop.f32.mrb[0].mxu0
  %1300 = vmatprep.mubr.f32.mxu0 0.0
  %1301 = vmatmul.mubr.f32.gmra.mrb[0].mxu0 %v1200
  %v1302 = vpop.f32.mrb[0].mxu0
  %v1303 = vadd.f32 0.0, %v1302
  %v1304 = vpop.f32.mrb[0].mxu0
  %1305 = vmatprep.mubr.f32.mxu0 0.0
  %1306 = vmatmul.mubr.f32.gmra.mrb[0].mxu0 %v1201
  %v1307 = vpop.f32.mrb[0].mxu0
  %v1308 = vadd.f32 0.0, %v1307
  %v1309 = vpop.f32.mrb[0].mxu0
  %1310 = vmatprep.mubr.f32.mxu0 0.0
  %1311 = vmatmul.mubr.f32.gmra.mrb[0].mxu0 %v1202
  %v1312 = vpop.f32.mrb[0].mxu0
  %v1313 = vadd.f32 0.0, %v1312
  %v1314 = vpop.f32.mrb[0].mxu0
  %1315 = vmatprep.mubr.f32.mxu0 0.0
  %1316 = vmatmul.mubr.f32.gmra.mrb[0].mxu0 %v1203
  %v1317 = vpop.f32.mrb[0].mxu0
  %v1318 = vadd.f32 0.0, %v1317
  %v1319 = vpop.f32.mrb[0].mxu0
  %1320 = vmatprep.mubr.f32.mxu0 0.0
  %1321 = vmatmul.mubr.f32.gmra.mrb[0].mxu0 %v1204
  %v1322 = vpop.f32.mrb[0].mxu0
  %v1323 = vadd.f32 0.0, %v1322
  %v1324 = vpop.f32.mrb[0].mxu0
  %1325 = vmatprep.mubr.f32.mxu0 0.0
  %1326 = vmatmul.mubr.f32.gmra.mrb[0].mxu0 %v1205
  %v1327 = vpop.f32.mrb[0].mxu0
  %v1328 = vadd.f32 0.0, %v1327
  %v1329 = vpop.f32.mrb[0].mxu0
  %1330 = vmatprep.mubr.f32.mxu0 0.0
  %1331 = vmatmul.mubr.f32.gmra.mrb[0].mxu0 %v1206
  %v1332 = vpop.f32.mrb[0].mxu0
  %v1333 = vadd.f32 0.0, %v1332
  %v1334 = vpop.f32.mrb[0].mxu0
  %1335 = vmatprep.mubr.f32.mxu0 0.0
  %1336 = vmatmul.mubr.f32.gmra.mrb[0].mxu0 %v1207
  %v1337 = vpop.f32.mrb[0].mxu0
  %v1338 = vadd.f32 0.0, %v1337
  %v1339 = vpop.f32.mrb[0].mxu0
  %1340 = vmatprep.mubr.f32.mxu0 0.0
  %1341 = vmatmul.mubr.f32.gmra.mrb[0].mxu0 %v1208
  %v1342 = vpop.f32.mrb[0].mxu0
  %v1343 = vadd.f32 0.0, %v1342
  %v1344 = vpop.f32.mrb[0].mxu0
  %1345 = vmatprep.mubr.f32.mxu0 0.0
  %1346 = vmatmul.mubr.f32.gmra.mrb[0].mxu0 %v1209
  %v1347 = vpop.f32.mrb[0].mxu0
  %v1348 = vadd.f32 0.0, %v1347
  %v1349 = vpop.f32.mrb[0].mxu0
  %1350 = vmatprep.mubr.f32.mxu0 0.0
  %1351 = vmatmul.mubr.f32.gmra.mrb[0].mxu0 %v1210
  %v1352 = vpop.f32.mrb[0].mxu0
  %v1353 = vadd.f32 0.0, %v1352
  %v1354 = vpop.f32.mrb[0].mxu0
  %1355 = vdwg.mxu0
  %v1356 = vadd.f32 %v1117, %v1278
  %v1357 = vadd.f32 %v1122, %v1283
  %v1358 = vadd.f32 %v1127, %v1288
  %v1359 = vadd.f32 %v1132, %v1293
  %v1360 = vadd.f32 %v1137, %v1298
  %v1361 = vadd.f32 %v1142, %v1303
  %v1362 = vadd.f32 %v1147, %v1308
  %v1363 = vadd.f32 %v1152, %v1313
  %v1364 = vadd.f32 %v1157, %v1318
  %v1365 = vadd.f32 %v1162, %v1323
  %v1366 = vadd.f32 %v1167, %v1328
  %v1367 = vadd.f32 %v1172, %v1333
  %v1368 = vadd.f32 %v1177, %v1338
  %v1369 = vadd.f32 %v1182, %v1343
  %v1370 = vadd.f32 %v1187, %v1348
  %v1371 = vadd.f32 %v1192, %v1353
  %v1372 = vxor.u32 %v1356, 2147483648
  %v1373 = vxor.u32 %v1357, 2147483648
  %v1374 = vxor.u32 %v1358, 2147483648
  %v1375 = vxor.u32 %v1359, 2147483648
  %v1376 = vxor.u32 %v1360, 2147483648
  %v1377 = vxor.u32 %v1361, 2147483648
  %v1378 = vxor.u32 %v1362, 2147483648
  %v1379 = vxor.u32 %v1363, 2147483648
  %v1380 = vxor.u32 %v1364, 2147483648
  %v1381 = vxor.u32 %v1365, 2147483648
  %v1382 = vxor.u32 %v1366, 2147483648
  %v1383 = vxor.u32 %v1367, 2147483648
  %v1384 = vxor.u32 %v1368, 2147483648
  %v1385 = vxor.u32 %v1369, 2147483648
  %v1386 = vxor.u32 %v1370, 2147483648
  %v1387 = vxor.u32 %v1371, 2147483648
  %v1388 = vmul.f32 %v1372, 1.442695
  %v1389 = vpow.pop %v1388
  %v1390 = vmul.f32 %v1373, 1.442695
  %v1391 = vpow.pop %v1390
  %v1392 = vmul.f32 %v1374, 1.442695
  %v1393 = vpow.pop %v1392
  %v1394 = vmul.f32 %v1375, 1.442695
  %v1395 = vpow.pop %v1394
  %v1396 = vmul.f32 %v1376, 1.442695
  %v1397 = vpow.pop %v1396
  %v1398 = vmul.f32 %v1377, 1.442695
  %v1399 = vpow.pop %v1398
  %v1400 = vmul.f32 %v1378, 1.442695
  %v1401 = vpow.pop %v1400
  %v1402 = vmul.f32 %v1379, 1.442695
  %v1403 = vpow.pop %v1402
  %v1404 = vmul.f32 %v1380, 1.442695
  %v1405 = vpow.pop %v1404
  %v1406 = vmul.f32 %v1381, 1.442695
  %v1407 = vpow.pop %v1406
  %v1408 = vmul.f32 %v1382, 1.442695
  %v1409 = vpow.pop %v1408
  %v1410 = vmul.f32 %v1383, 1.442695
  %v1411 = vpow.pop %v1410
  %v1412 = vmul.f32 %v1384, 1.442695
  %v1413 = vpow.pop %v1412
  %v1414 = vmul.f32 %v1385, 1.442695
  %v1415 = vpow.pop %v1414
  %v1416 = vmul.f32 %v1386, 1.442695
  %v1417 = vpow.pop %v1416
  %v1418 = vmul.f32 %v1387, 1.442695
  %v1419 = vpow.pop %v1418
  %v1420 = vadd.f32 %v1389, 1.0
  %v1421 = vadd.f32 %v1391, 1.0
  %v1422 = vadd.f32 %v1393, 1.0
  %v1423 = vadd.f32 %v1395, 1.0
  %v1424 = vadd.f32 %v1397, 1.0
  %v1425 = vadd.f32 %v1399, 1.0
  %v1426 = vadd.f32 %v1401, 1.0
  %v1427 = vadd.f32 %v1403, 1.0
  %v1428 = vadd.f32 %v1405, 1.0
  %v1429 = vadd.f32 %v1407, 1.0
  %v1430 = vadd.f32 %v1409, 1.0
  %v1431 = vadd.f32 %v1411, 1.0
  %v1432 = vadd.f32 %v1413, 1.0
  %v1433 = vadd.f32 %v1415, 1.0
  %v1434 = vadd.f32 %v1417, 1.0
  %v1435 = vadd.f32 %v1419, 1.0
  %v1436 = vrcp.pop %v1420
  %v1437 = vmul.f32 1.0, %v1436
  %v1438 = vrcp.pop %v1421
  %v1439 = vmul.f32 1.0, %v1438
  %v1440 = vrcp.pop %v1422
  %v1441 = vmul.f32 1.0, %v1440
  %v1442 = vrcp.pop %v1423
  %v1443 = vmul.f32 1.0, %v1442
  %v1444 = vrcp.pop %v1424
  %v1445 = vmul.f32 1.0, %v1444
  %v1446 = vrcp.pop %v1425
  %v1447 = vmul.f32 1.0, %v1446
  %v1448 = vrcp.pop %v1426
  %v1449 = vmul.f32 1.0, %v1448
  %v1450 = vrcp.pop %v1427
  %v1451 = vmul.f32 1.0, %v1450
  %v1452 = vrcp.pop %v1428
  %v1453 = vmul.f32 1.0, %v1452
  %v1454 = vrcp.pop %v1429
  %v1455 = vmul.f32 1.0, %v1454
  %v1456 = vrcp.pop %v1430
  %v1457 = vmul.f32 1.0, %v1456
  %v1458 = vrcp.pop %v1431
  %v1459 = vmul.f32 1.0, %v1458
  %v1460 = vrcp.pop %v1432
  %v1461 = vmul.f32 1.0, %v1460
  %v1462 = vrcp.pop %v1433
  %v1463 = vmul.f32 1.0, %v1462
  %v1464 = vrcp.pop %v1434
  %v1465 = vmul.f32 1.0, %v1464
  %v1466 = vrcp.pop %v1435
  %v1467 = vmul.f32 1.0, %v1466
  %1468 = vst [vmem:[%s11] sm:$0xff] %v1437
  %1469 = vst [vmem:[%s11 + $0x8] sm:$0xff] %v1439
  %1470 = vst [vmem:[%s11 + $0x10] sm:$0xff] %v1441
  %1471 = vst [vmem:[%s11 + $0x18] sm:$0xff] %v1443
  %1472 = vst [vmem:[%s11 + $0x20] sm:$0xff] %v1445
  %1473 = vst [vmem:[%s11 + $0x28] sm:$0xff] %v1447
  %1474 = vst [vmem:[%s11 + $0x30] sm:$0xff] %v1449
  %1475 = vst [vmem:[%s11 + $0x38] sm:$0xff] %v1451
  %1476 = vst [vmem:[%s11 + $0x40] sm:$0xff] %v1453
  %1477 = vst [vmem:[%s11 + $0x48] sm:$0xff] %v1455
  %1478 = vst [vmem:[%s11 + $0x50] sm:$0xff] %v1457
  %1479 = vst [vmem:[%s11 + $0x58] sm:$0xff] %v1459
  %1480 = vst [vmem:[%s11 + $0x60] sm:$0xff] %v1461
  %1481 = vst [vmem:[%s11 + $0x68] sm:$0xff] %v1463
  %1482 = vst [vmem:[%s11 + $0x70] sm:$0xff] %v1465
  %1483 = vst [vmem:[%s11 + $0x78] sm:$0xff] %v1467
  %v1484 = vld [vmem:[%s8] sm:$0xff]
  %v1485 = vld [vmem:[%s8 + $0x8] sm:$0xff]
  %v1486 = vld [vmem:[%s8 + $0x10] sm:$0xff]
  %v1487 = vld [vmem:[%s8 + $0x18] sm:$0xff]
  %v1488 = vld [vmem:[%s8 + $0x20] sm:$0xff]
  %v1489 = vld [vmem:[%s8 + $0x28] sm:$0xff]
  %v1490 = vld [vmem:[%s8 + $0x30] sm:$0xff]
  %v1491 = vld [vmem:[%s8 + $0x38] sm:$0xff]
  %v1492 = vld [vmem:[%s8 + $0x40] sm:$0xff]
  %v1493 = vld [vmem:[%s8 + $0x48] sm:$0xff]
  %v1494 = vld [vmem:[%s8 + $0x50] sm:$0xff]
  %v1495 = vld [vmem:[%s8 + $0x58] sm:$0xff]
  %v1496 = vld [vmem:[%s8 + $0x60] sm:$0xff]
  %v1497 = vld [vmem:[%s8 + $0x68] sm:$0xff]
  %v1498 = vld [vmem:[%s8 + $0x70] sm:$0xff]
  %v1499 = vld [vmem:[%s8 + $0x78] sm:$0xff]
  %v1500 = vld [vmem:[%s9] sm:$0xff]
  %v1501 = vld [vmem:[%s9 + $0x8] sm:$0xff]
  %v1502 = vld [vmem:[%s9 + $0x10] sm:$0xff]
  %v1503 = vld [vmem:[%s9 + $0x18] sm:$0xff]
  %v1504 = vld [vmem:[%s9 + $0x20] sm:$0xff]
  %v1505 = vld [vmem:[%s9 + $0x28] sm:$0xff]
  %v1506 = vld [vmem:[%s9 + $0x30] sm:$0xff]
  %v1507 = vld [vmem:[%s9 + $0x38] sm:$0xff]
  %v1508 = vld [vmem:[%s9 + $0x40] sm:$0xff]
  %v1509 = vld [vmem:[%s9 + $0x48] sm:$0xff]
  %v1510 = vld [vmem:[%s9 + $0x50] sm:$0xff]
  %v1511 = vld [vmem:[%s9 + $0x58] sm:$0xff]
  %v1512 = vld [vmem:[%s9 + $0x60] sm:$0xff]
  %v1513 = vld [vmem:[%s9 + $0x68] sm:$0xff]
  %v1514 = vld [vmem:[%s9 + $0x70] sm:$0xff]
  %v1515 = vld [vmem:[%s9 + $0x78] sm:$0xff]
  %1516 = vmatprep.subr.mxu0 0.0
  %1517 = vmatpush1.msra.mxu0 %v329
  %1518 = vmatprep.subr.mxu0 0.0
  %1519 = vmatpush1.msra.mxu0 %v334
  %1520 = vmatprep.subr.mxu0 0.0
  %1521 = vmatpush1.msra.mxu0 %v339
  %1522 = vmatprep.subr.mxu0 0.0
  %1523 = vmatpush1.msra.mxu0 %v344
  %1524 = vmatprep.subr.mxu0 0.0
  %1525 = vmatpush1.msra.mxu0 %v349
  %1526 = vmatprep.subr.mxu0 0.0
  %1527 = vmatpush1.msra.mxu0 %v354
  %1528 = vmatprep.subr.mxu0 0.0
  %1529 = vmatpush1.msra.mxu0 %v359
  %1530 = vmatprep.subr.mxu0 0.0
  %1531 = vmatpush1.msra.mxu0 %v364
  %1532 = vmatprep.subr.mxu0 0.0
  %1533 = vmatpush1.msra.mxu0 %v369
  %1534 = vmatprep.subr.mxu0 0.0
  %1535 = vmatpush1.msra.mxu0 %v374
  %1536 = vmatprep.subr.mxu0 0.0
  %1537 = vmatpush1.msra.mxu0 %v379
  %1538 = vmatprep.subr.mxu0 0.0
  %1539 = vmatpush1.msra.mxu0 %v384
  %1540 = vmatprep.subr.mxu0 0.0
  %1541 = vmatpush1.msra.mxu0 %v389
  %1542 = vmatprep.subr.mxu0 0.0
  %1543 = vmatpush1.msra.mxu0 %v394
  %1544 = vmatprep.subr.mxu0 0.0
  %1545 = vmatpush1.msra.mxu0 %v399
  %1546 = vmatprep.subr.mxu0 0.0
  %1547 = vmatpush1.msra.mxu0 %v404
  %1548 = vmatprep.subr.mxu0 0.0
  %1549 = vmatpush1.msra.mxu0 0.0
  %1550 = vmatprep.subr.mxu0 0.0
  %1551 = vmatpush1.msra.mxu0 0.0
  %1552 = vmatprep.subr.mxu0 0.0
  %1553 = vmatpush1.msra.mxu0 0.0
  %1554 = vmatprep.subr.mxu0 0.0
  %1555 = vmatpush1.msra.mxu0 0.0
  %1556 = vmatprep.subr.mxu0 0.0
  %1557 = vmatpush1.msra.mxu0 0.0
  %1558 = vmatprep.subr.mxu0 0.0
  %1559 = vmatpush1.msra.mxu0 0.0
  %1560 = vmatprep.subr.mxu0 0.0
  %1561 = vmatpush1.msra.mxu0 0.0
  %1562 = vmatprep.subr.mxu0 0.0
  %1563 = vmatpush1.msra.mxu0 0.0
  %1564 = vmatprep.subr.mxu0 0.0
  %1565 = vmatpush1.msra.mxu0 0.0
  %1566 = vmatprep.subr.mxu0 0.0
  %1567 = vmatpush1.msra.mxu0 0.0
  %1568 = vmatprep.subr.mxu0 0.0
  %1569 = vmatpush1.msra.mxu0 0.0
  %1570 = vmatprep.subr.mxu0 0.0
  %1571 = vmatpush1.msra.mxu0 0.0
  %1572 = vmatprep.subr.mxu0 0.0
  %1573 = vmatpush1.msra.mxu0 0.0
  %1574 = vmatprep.subr.mxu0 0.0
  %1575 = vmatpush1.msra.mxu0 0.0
  %1576 = vmatprep.subr.mxu0 0.0
  %1577 = vmatpush1.msra.mxu0 0.0
  %1578 = vmatprep.subr.mxu0 0.0
  %1579 = vmatpush1.msra.mxu0 0.0
  %1580 = vmatprep.mubr.f32.mxu0 0.0
  %1581 = vmatmul.mubr.f32.gmra.mrb[0].mxu0 %v1500
  %v1582 = vpop.f32.mrb[0].mxu0
  %v1583 = vadd.f32 0.0, %v1582
  %v1584 = vpop.f32.mrb[0].mxu0
  %1585 = vmatprep.mubr.f32.mxu0 0.0
  %1586 = vmatmul.mubr.f32.gmra.mrb[0].mxu0 %v1501
  %v1587 = vpop.f32.mrb[0].mxu0
  %v1588 = vadd.f32 0.0, %v1587
  %v1589 = vpop.f32.mrb[0].mxu0
  %1590 = vmatprep.mubr.f32.mxu0 0.0
  %1591 = vmatmul.mubr.f32.gmra.mrb[0].mxu0 %v1502
  %v1592 = vpop.f32.mrb[0].mxu0
  %v1593 = vadd.f32 0.0, %v1592
  %v1594 = vpop.f32.mrb[0].mxu0
  %1595 = vmatprep.mubr.f32.mxu0 0.0
  %1596 = vmatmul.mubr.f32.gmra.mrb[0].mxu0 %v1503
  %v1597 = vpop.f32.mrb[0].mxu0
  %v1598 = vadd.f32 0.0, %v1597
  %v1599 = vpop.f32.mrb[0].mxu0
  %1600 = vmatprep.mubr.f32.mxu0 0.0
  %1601 = vmatmul.mubr.f32.gmra.mrb[0].mxu0 %v1504
  %v1602 = vpop.f32.mrb[0].mxu0
  %v1603 = vadd.f32 0.0, %v1602
  %v1604 = vpop.f32.mrb[0].mxu0
  %1605 = vmatprep.mubr.f32.mxu0 0.0
  %1606 = vmatmul.mubr.f32.gmra.mrb[0].mxu0 %v1505
  %v1607 = vpop.f32.mrb[0].mxu0
  %v1608 = vadd.f32 0.0, %v1607
  %v1609 = vpop.f32.mrb[0].mxu0
  %1610 = vmatprep.mubr.f32.mxu0 0.0
  %1611 = vmatmul.mubr.f32.gmra.mrb[0].mxu0 %v1506
  %v1612 = vpop.f32.mrb[0].mxu0
  %v1613 = vadd.f32 0.0, %v1612
  %v1614 = vpop.f32.mrb[0].mxu0
  %1615 = vmatprep.mubr.f32.mxu0 0.0
  %1616 = vmatmul.mubr.f32.gmra.mrb[0].mxu0 %v1507
  %v1617 = vpop.f32.mrb[0].mxu0
  %v1618 = vadd.f32 0.0, %v1617
  %v1619 = vpop.f32.mrb[0].mxu0
  %1620 = vmatprep.mubr.f32.mxu0 0.0
  %1621 = vmatmul.mubr.f32.gmra.mrb[0].mxu0 %v1508
  %v1622 = vpop.f32.mrb[0].mxu0
  %v1623 = vadd.f32 0.0, %v1622
  %v1624 = vpop.f32.mrb[0].mxu0
  %1625 = vmatprep.mubr.f32.mxu0 0.0
  %1626 = vmatmul.mubr.f32.gmra.mrb[0].mxu0 %v1509
  %v1627 = vpop.f32.mrb[0].mxu0
  %v1628 = vadd.f32 0.0, %v1627
  %v1629 = vpop.f32.mrb[0].mxu0
  %1630 = vmatprep.mubr.f32.mxu0 0.0
  %1631 = vmatmul.mubr.f32.gmra.mrb[0].mxu0 %v1510
  %v1632 = vpop.f32.mrb[0].mxu0
  %v1633 = vadd.f32 0.0, %v1632
  %v1634 = vpop.f32.mrb[0].mxu0
  %1635 = vmatprep.mubr.f32.mxu0 0.0
  %1636 = vmatmul.mubr.f32.gmra.mrb[0].mxu0 %v1511
  %v1637 = vpop.f32.mrb[0].mxu0
  %v1638 = vadd.f32 0.0, %v1637
  %v1639 = vpop.f32.mrb[0].mxu0
  %1640 = vmatprep.mubr.f32.mxu0 0.0
  %1641 = vmatmul.mubr.f32.gmra.mrb[0].mxu0 %v1512
  %v1642 = vpop.f32.mrb[0].mxu0
  %v1643 = vadd.f32 0.0, %v1642
  %v1644 = vpop.f32.mrb[0].mxu0
  %1645 = vmatprep.mubr.f32.mxu0 0.0
  %1646 = vmatmul.mubr.f32.gmra.mrb[0].mxu0 %v1513
  %v1647 = vpop.f32.mrb[0].mxu0
  %v1648 = vadd.f32 0.0, %v1647
  %v1649 = vpop.f32.mrb[0].mxu0
  %1650 = vmatprep.mubr.f32.mxu0 0.0
  %1651 = vmatmul.mubr.f32.gmra.mrb[0].mxu0 %v1514
  %v1652 = vpop.f32.mrb[0].mxu0
  %v1653 = vadd.f32 0.0, %v1652
  %v1654 = vpop.f32.mrb[0].mxu0
  %1655 = vmatprep.mubr.f32.mxu0 0.0
  %1656 = vmatmul.mubr.f32.gmra.mrb[0].mxu0 %v1515
  %v1657 = vpop.f32.mrb[0].mxu0
  %v1658 = vadd.f32 0.0, %v1657
  %v1659 = vpop.f32.mrb[0].mxu0
  %1660 = vdwg.mxu0
  %1661 = vmatprep.subr.mxu0 0.0
  %1662 = vmatpush1.msra.mxu0 %v249
  %1663 = vmatprep.subr.mxu0 0.0
  %1664 = vmatpush1.msra.mxu0 %v254
  %1665 = vmatprep.subr.mxu0 0.0
  %1666 = vmatpush1.msra.mxu0 %v259
  %1667 = vmatprep.subr.mxu0 0.0
  %1668 = vmatpush1.msra.mxu0 %v264
  %1669 = vmatprep.subr.mxu0 0.0
  %1670 = vmatpush1.msra.mxu0 %v269
  %1671 = vmatprep.subr.mxu0 0.0
  %1672 = vmatpush1.msra.mxu0 %v274
  %1673 = vmatprep.subr.mxu0 0.0
  %1674 = vmatpush1.msra.mxu0 %v279
  %1675 = vmatprep.subr.mxu0 0.0
  %1676 = vmatpush1.msra.mxu0 %v284
  %1677 = vmatprep.subr.mxu0 0.0
  %1678 = vmatpush1.msra.mxu0 %v289
  %1679 = vmatprep.subr.mxu0 0.0
  %1680 = vmatpush1.msra.mxu0 %v294
  %1681 = vmatprep.subr.mxu0 0.0
  %1682 = vmatpush1.msra.mxu0 %v299
  %1683 = vmatprep.subr.mxu0 0.0
  %1684 = vmatpush1.msra.mxu0 %v304
  %1685 = vmatprep.subr.mxu0 0.0
  %1686 = vmatpush1.msra.mxu0 %v309
  %1687 = vmatprep.subr.mxu0 0.0
  %1688 = vmatpush1.msra.mxu0 %v314
  %1689 = vmatprep.subr.mxu0 0.0
  %1690 = vmatpush1.msra.mxu0 %v319
  %1691 = vmatprep.subr.mxu0 0.0
  %1692 = vmatpush1.msra.mxu0 %v324
  %1693 = vmatprep.subr.mxu0 0.0
  %1694 = vmatpush1.msra.mxu0 0.0
  %1695 = vmatprep.subr.mxu0 0.0
  %1696 = vmatpush1.msra.mxu0 0.0
  %1697 = vmatprep.subr.mxu0 0.0
  %1698 = vmatpush1.msra.mxu0 0.0
  %1699 = vmatprep.subr.mxu0 0.0
  %1700 = vmatpush1.msra.mxu0 0.0
  %1701 = vmatprep.subr.mxu0 0.0
  %1702 = vmatpush1.msra.mxu0 0.0
  %1703 = vmatprep.subr.mxu0 0.0
  %1704 = vmatpush1.msra.mxu0 0.0
  %1705 = vmatprep.subr.mxu0 0.0
  %1706 = vmatpush1.msra.mxu0 0.0
  %1707 = vmatprep.subr.mxu0 0.0
  %1708 = vmatpush1.msra.mxu0 0.0
  %1709 = vmatprep.subr.mxu0 0.0
  %1710 = vmatpush1.msra.mxu0 0.0
  %1711 = vmatprep.subr.mxu0 0.0
  %1712 = vmatpush1.msra.mxu0 0.0
  %1713 = vmatprep.subr.mxu0 0.0
  %1714 = vmatpush1.msra.mxu0 0.0
  %1715 = vmatprep.subr.mxu0 0.0
  %1716 = vmatpush1.msra.mxu0 0.0
  %1717 = vmatprep.subr.mxu0 0.0
  %1718 = vmatpush1.msra.mxu0 0.0
  %1719 = vmatprep.subr.mxu0 0.0
  %1720 = vmatpush1.msra.mxu0 0.0
  %1721 = vmatprep.subr.mxu0 0.0
  %1722 = vmatpush1.msra.mxu0 0.0
  %1723 = vmatprep.subr.mxu0 0.0
  %1724 = vmatpush1.msra.mxu0 0.0
  %1725 = vmatprep.mubr.f32.mxu0 0.0
  %1726 = vmatmul.mubr.f32.gmra.mrb[0].mxu0 %v1484
  %v1727 = vpop.f32.mrb[0].mxu0
  %v1728 = vadd.f32 %v1583, %v1727
  %v1729 = vpop.f32.mrb[0].mxu0
  %1730 = vmatprep.mubr.f32.mxu0 0.0
  %1731 = vmatmul.mubr.f32.gmra.mrb[0].mxu0 %v1485
  %v1732 = vpop.f32.mrb[0].mxu0
  %v1733 = vadd.f32 %v1588, %v1732
  %v1734 = vpop.f32.mrb[0].mxu0
  %1735 = vmatprep.mubr.f32.mxu0 0.0
  %1736 = vmatmul.mubr.f32.gmra.mrb[0].mxu0 %v1486
  %v1737 = vpop.f32.mrb[0].mxu0
  %v1738 = vadd.f32 %v1593, %v1737
  %v1739 = vpop.f32.mrb[0].mxu0
  %1740 = vmatprep.mubr.f32.mxu0 0.0
  %1741 = vmatmul.mubr.f32.gmra.mrb[0].mxu0 %v1487
  %v1742 = vpop.f32.mrb[0].mxu0
  %v1743 = vadd.f32 %v1598, %v1742
  %v1744 = vpop.f32.mrb[0].mxu0
  %1745 = vmatprep.mubr.f32.mxu0 0.0
  %1746 = vmatmul.mubr.f32.gmra.mrb[0].mxu0 %v1488
  %v1747 = vpop.f32.mrb[0].mxu0
  %v1748 = vadd.f32 %v1603, %v1747
  %v1749 = vpop.f32.mrb[0].mxu0
  %1750 = vmatprep.mubr.f32.mxu0 0.0
  %1751 = vmatmul.mubr.f32.gmra.mrb[0].mxu0 %v1489
  %v1752 = vpop.f32.mrb[0].mxu0
  %v1753 = vadd.f32 %v1608, %v1752
  %v1754 = vpop.f32.mrb[0].mxu0
  %1755 = vmatprep.mubr.f32.mxu0 0.0
  %1756 = vmatmul.mubr.f32.gmra.mrb[0].mxu0 %v1490
  %v1757 = vpop.f32.mrb[0].mxu0
  %v1758 = vadd.f32 %v1613, %v1757
  %v1759 = vpop.f32.mrb[0].mxu0
  %1760 = vmatprep.mubr.f32.mxu0 0.0
  %1761 = vmatmul.mubr.f32.gmra.mrb[0].mxu0 %v1491
  %v1762 = vpop.f32.mrb[0].mxu0
  %v1763 = vadd.f32 %v1618, %v1762
  %v1764 = vpop.f32.mrb[0].mxu0
  %1765 = vmatprep.mubr.f32.mxu0 0.0
  %1766 = vmatmul.mubr.f32.gmra.mrb[0].mxu0 %v1492
  %v1767 = vpop.f32.mrb[0].mxu0
  %v1768 = vadd.f32 %v1623, %v1767
  %v1769 = vpop.f32.mrb[0].mxu0
  %1770 = vmatprep.mubr.f32.mxu0 0.0
  %1771 = vmatmul.mubr.f32.gmra.mrb[0].mxu0 %v1493
  %v1772 = vpop.f32.mrb[0].mxu0
  %v1773 = vadd.f32 %v1628, %v1772
  %v1774 = vpop.f32.mrb[0].mxu0
  %1775 = vmatprep.mubr.f32.mxu0 0.0
  %1776 = vmatmul.mubr.f32.gmra.mrb[0].mxu0 %v1494
  %v1777 = vpop.f32.mrb[0].mxu0
  %v1778 = vadd.f32 %v1633, %v1777
  %v1779 = vpop.f32.mrb[0].mxu0
  %1780 = vmatprep.mubr.f32.mxu0 0.0
  %1781 = vmatmul.mubr.f32.gmra.mrb[0].mxu0 %v1495
  %v1782 = vpop.f32.mrb[0].mxu0
  %v1783 = vadd.f32 %v1638, %v1782
  %v1784 = vpop.f32.mrb[0].mxu0
  %1785 = vmatprep.mubr.f32.mxu0 0.0
  %1786 = vmatmul.mubr.f32.gmra.mrb[0].mxu0 %v1496
  %v1787 = vpop.f32.mrb[0].mxu0
  %v1788 = vadd.f32 %v1643, %v1787
  %v1789 = vpop.f32.mrb[0].mxu0
  %1790 = vmatprep.mubr.f32.mxu0 0.0
  %1791 = vmatmul.mubr.f32.gmra.mrb[0].mxu0 %v1497
  %v1792 = vpop.f32.mrb[0].mxu0
  %v1793 = vadd.f32 %v1648, %v1792
  %v1794 = vpop.f32.mrb[0].mxu0
  %1795 = vmatprep.mubr.f32.mxu0 0.0
  %1796 = vmatmul.mubr.f32.gmra.mrb[0].mxu0 %v1498
  %v1797 = vpop.f32.mrb[0].mxu0
  %v1798 = vadd.f32 %v1653, %v1797
  %v1799 = vpop.f32.mrb[0].mxu0
  %1800 = vmatprep.mubr.f32.mxu0 0.0
  %1801 = vmatmul.mubr.f32.gmra.mrb[0].mxu0 %v1499
  %v1802 = vpop.f32.mrb[0].mxu0
  %v1803 = vadd.f32 %v1658, %v1802
  %v1804 = vpop.f32.mrb[0].mxu0
  %1805 = vdwg.mxu0
  %v1806 = vxor.u32 %v1728, 2147483648
  %v1807 = vxor.u32 %v1733, 2147483648
  %v1808 = vxor.u32 %v1738, 2147483648
  %v1809 = vxor.u32 %v1743, 2147483648
  %v1810 = vxor.u32 %v1748, 2147483648
  %v1811 = vxor.u32 %v1753, 2147483648
  %v1812 = vxor.u32 %v1758, 2147483648
  %v1813 = vxor.u32 %v1763, 2147483648
  %v1814 = vxor.u32 %v1768, 2147483648
  %v1815 = vxor.u32 %v1773, 2147483648
  %v1816 = vxor.u32 %v1778, 2147483648
  %v1817 = vxor.u32 %v1783, 2147483648
  %v1818 = vxor.u32 %v1788, 2147483648
  %v1819 = vxor.u32 %v1793, 2147483648
  %v1820 = vxor.u32 %v1798, 2147483648
  %v1821 = vxor.u32 %v1803, 2147483648
  %v1822 = vmul.f32 %v1806, 1.442695
  %v1823 = vpow.pop %v1822
  %v1824 = vmul.f32 %v1807, 1.442695
  %v1825 = vpow.pop %v1824
  %v1826 = vmul.f32 %v1808, 1.442695
  %v1827 = vpow.pop %v1826
  %v1828 = vmul.f32 %v1809, 1.442695
  %v1829 = vpow.pop %v1828
  %v1830 = vmul.f32 %v1810, 1.442695
  %v1831 = vpow.pop %v1830
  %v1832 = vmul.f32 %v1811, 1.442695
  %v1833 = vpow.pop %v1832
  %v1834 = vmul.f32 %v1812, 1.442695
  %v1835 = vpow.pop %v1834
  %v1836 = vmul.f32 %v1813, 1.442695
  %v1837 = vpow.pop %v1836
  %v1838 = vmul.f32 %v1814, 1.442695
  %v1839 = vpow.pop %v1838
  %v1840 = vmul.f32 %v1815, 1.442695
  %v1841 = vpow.pop %v1840
  %v1842 = vmul.f32 %v1816, 1.442695
  %v1843 = vpow.pop %v1842
  %v1844 = vmul.f32 %v1817, 1.442695
  %v1845 = vpow.pop %v1844
  %v1846 = vmul.f32 %v1818, 1.442695
  %v1847 = vpow.pop %v1846
  %v1848 = vmul.f32 %v1819, 1.442695
  %v1849 = vpow.pop %v1848
  %v1850 = vmul.f32 %v1820, 1.442695
  %v1851 = vpow.pop %v1850
  %v1852 = vmul.f32 %v1821, 1.442695
  %v1853 = vpow.pop %v1852
  %v1854 = vadd.f32 %v1823, 1.0
  %v1855 = vadd.f32 %v1825, 1.0
  %v1856 = vadd.f32 %v1827, 1.0
  %v1857 = vadd.f32 %v1829, 1.0
  %v1858 = vadd.f32 %v1831, 1.0
  %v1859 = vadd.f32 %v1833, 1.0
  %v1860 = vadd.f32 %v1835, 1.0
  %v1861 = vadd.f32 %v1837, 1.0
  %v1862 = vadd.f32 %v1839, 1.0
  %v1863 = vadd.f32 %v1841, 1.0
  %v1864 = vadd.f32 %v1843, 1.0
  %v1865 = vadd.f32 %v1845, 1.0
  %v1866 = vadd.f32 %v1847, 1.0
  %v1867 = vadd.f32 %v1849, 1.0
  %v1868 = vadd.f32 %v1851, 1.0
  %v1869 = vadd.f32 %v1853, 1.0
  %v1870 = vrcp.pop %v1854
  %v1871 = vmul.f32 1.0, %v1870
  %v1872 = vrcp.pop %v1855
  %v1873 = vmul.f32 1.0, %v1872
  %v1874 = vrcp.pop %v1856
  %v1875 = vmul.f32 1.0, %v1874
  %v1876 = vrcp.pop %v1857
  %v1877 = vmul.f32 1.0, %v1876
  %v1878 = vrcp.pop %v1858
  %v1879 = vmul.f32 1.0, %v1878
  %v1880 = vrcp.pop %v1859
  %v1881 = vmul.f32 1.0, %v1880
  %v1882 = vrcp.pop %v1860
  %v1883 = vmul.f32 1.0, %v1882
  %v1884 = vrcp.pop %v1861
  %v1885 = vmul.f32 1.0, %v1884
  %v1886 = vrcp.pop %v1862
  %v1887 = vmul.f32 1.0, %v1886
  %v1888 = vrcp.pop %v1863
  %v1889 = vmul.f32 1.0, %v1888
  %v1890 = vrcp.pop %v1864
  %v1891 = vmul.f32 1.0, %v1890
  %v1892 = vrcp.pop %v1865
  %v1893 = vmul.f32 1.0, %v1892
  %v1894 = vrcp.pop %v1866
  %v1895 = vmul.f32 1.0, %v1894
  %v1896 = vrcp.pop %v1867
  %v1897 = vmul.f32 1.0, %v1896
  %v1898 = vrcp.pop %v1868
  %v1899 = vmul.f32 1.0, %v1898
  %v1900 = vrcp.pop %v1869
  %v1901 = vmul.f32 1.0, %v1900
  %1902 = vst [vmem:[%s12] sm:$0xff] %v1871
  %1903 = vst [vmem:[%s12 + $0x8] sm:$0xff] %v1873
  %1904 = vst [vmem:[%s12 + $0x10] sm:$0xff] %v1875
  %1905 = vst [vmem:[%s12 + $0x18] sm:$0xff] %v1877
  %1906 = vst [vmem:[%s12 + $0x20] sm:$0xff] %v1879
  %1907 = vst [vmem:[%s12 + $0x28] sm:$0xff] %v1881
  %1908 = vst [vmem:[%s12 + $0x30] sm:$0xff] %v1883
  %1909 = vst [vmem:[%s12 + $0x38] sm:$0xff] %v1885
  %1910 = vst [vmem:[%s12 + $0x40] sm:$0xff] %v1887
  %1911 = vst [vmem:[%s12 + $0x48] sm:$0xff] %v1889
  %1912 = vst [vmem:[%s12 + $0x50] sm:$0xff] %v1891
  %1913 = vst [vmem:[%s12 + $0x58] sm:$0xff] %v1893
  %1914 = vst [vmem:[%s12 + $0x60] sm:$0xff] %v1895
  %1915 = vst [vmem:[%s12 + $0x68] sm:$0xff] %v1897
  %1916 = vst [vmem:[%s12 + $0x70] sm:$0xff] %v1899
  %1917 = vst [vmem:[%s12 + $0x78] sm:$0xff] %v1901
  // Predicated region
  $region42: #{scconv_layer.1} parent=0 // pred_check
    _
  $region43: #{scconv_layer.1} parent=0 // pred_check_branch
    %1919 = sbr.rel (0) target = $region45
  $region44: #{scconv_layer.1} parent=0 // pred_region
    _
  $region45: #{scconv_layer.1} parent=0 // pred_fallthru
    _
  // Predicated region
  $region46: #{scconv_layer.1} parent=0 // pred_check
    _
  $region47: #{scconv_layer.1} parent=0 // pred_check_branch
    %1921 = sbr.rel (0) target = $region49
  $region48: #{scconv_layer.1} parent=0 // pred_region
    _
  $region49: #{scconv_layer.1} parent=0 // pred_fallthru
    _
  // Predicated region
  $region50: #{scconv_layer.1} parent=0 // pred_check
    _
  $region51: #{scconv_layer.1} parent=0 // pred_check_branch
    %1923 = sbr.rel (0) target = $region53
  $region52: #{scconv_layer.1} parent=0 // pred_region
    _
  $region53: #{scconv_layer.1} parent=0 // pred_fallthru
    _
  // Predicated region
  $region54: #{scconv_layer.1} parent=0 // pred_check
    _
  $region55: #{scconv_layer.1} parent=0 // pred_check_branch
    %1925 = sbr.rel (0) target = $region57
  $region56: #{scconv_layer.1} parent=0 // pred_region
    _
  $region57: #{scconv_layer.1} parent=0 // pred_fallthru
    _
  // Predicated region
  $region58: #{scconv_layer.1} parent=0 // pred_check
    _
  $region59: #{scconv_layer.1} parent=0 // pred_check_branch
    %1927 = sbr.rel (0) target = $region61
  $region60: #{scconv_layer.1} parent=0 // pred_region
    _
  $region61: #{scconv_layer.1} parent=0 // pred_fallthru
    _
  // Predicated region
  $region62: #{scconv_layer.1} parent=0 // pred_check
    _
  $region63: #{scconv_layer.1} parent=0 // pred_check_branch
    %1929 = sbr.rel (0) target = $region65
  $region64: #{scconv_layer.1} parent=0 // pred_region
    _
  $region65: #{scconv_layer.1} parent=0 // pred_fallthru
    _

</llo_original>
